<compile_context>
chip_gen: v5e
topology: v5e:2x2
jax: 0.10.0
libtpu: 0.0.40
codegen_flags: <defaults>
</compile_context>

<pallas_src>
import functools

import jax
import jax.numpy as jnp
from jax import lax
from jax.experimental import pallas as pl
from jax.experimental.pallas import tpu as pltpu


# ----------------------------------------------------------------------------
# helpers
# ----------------------------------------------------------------------------
def bn_fold(gamma, beta, mean, var, eps=1e-5):
    scale = gamma / jnp.sqrt(var + eps)
    bias = beta - mean * scale
    return scale, bias


def _pick_tile_h(h_out, target):
    t = max(1, min(target, h_out))
    while h_out % t:
        t -= 1
    return t


# ----------------------------------------------------------------------------
# fused Pallas kernel: one grid step == one spatial row strip of one image
# ----------------------------------------------------------------------------
def _fused_block_kernel(x_ref, w1_ref, w2_ref, s2_ref, b2_ref,
                        w3_ref, s3_ref, b3_ref, *rest,
                        stride, tile_h, wp, wo, shortcut):
    # x_ref : (1, TH_in*Wp, Cin+1) bf16  zero-padded input strip, (row,col) flat;
    #                                    last channel = 1/0 validity indicator
    #                                    carrying the BN1 bias.
    # w1_ref: (Cin+1, planes)  bf16      conv1 weights with BN1 folded in.
    # w2_ref: (9, planes)      f32       depthwise 3x3 taps.
    # w3_ref: (planes, Cout)   bf16      projection weights.
    # rest  : [res (1,tile_h*W,Cin) bf16, [ws,ss,bs]], o_ref (1,tile_h*Wo,Cout) f32,
    #         d_ref (tile_h*Wo, planes) bf16 VMEM scratch.
    if shortcut == "conv":
        r_ref, ws_ref, ss_ref, bs_ref, o_ref, d_ref = rest
    elif shortcut == "identity":
        r_ref, o_ref, d_ref = rest
    else:
        o_ref, d_ref = rest

    planes = w1_ref.shape[1]

    # ---- expand: 1x1 conv (+ folded BN1) + ReLU  (MXU) --------------------
    # Padding pixels have x == 0 and indicator == 0 -> exactly 0 after ReLU,
    # which is the zero padding the depthwise conv needs.
    e = jnp.dot(x_ref[0], w1_ref[...], preferred_element_type=jnp.float32)
    e = jnp.maximum(e, 0.0)                        # (TH_in*Wp, planes) f32

    # ---- depthwise 3x3 (stride, pad=1) + BN2 + ReLU  (VPU) ----------------
    w2 = w2_ref[...]
    s2 = s2_ref[...]
    b2 = b2_ref[...]
    for h in range(tile_h):                        # unrolled over strip rows
        acc = jnp.zeros((wo, planes), jnp.float32)
        for kh in range(3):
            base = (h * stride + kh) * wp
            for kw in range(3):
                start = base + kw
                tap = e[start:start + (wo - 1) * stride + 1:stride, :]
                acc = acc + tap * w2[kh * 3 + kw:kh * 3 + kw + 1, :]
        d = jnp.maximum(acc * s2 + b2, 0.0)
        d_ref[h * wo:(h + 1) * wo, :] = d.astype(d_ref.dtype)

    # ---- project: 1x1 conv + BN3 (+ fused shortcut)  (MXU) ----------------
    out = jnp.dot(d_ref[...], w3_ref[...], preferred_element_type=jnp.float32)
    out = out * s3_ref[...] + b3_ref[...]
    if shortcut == "identity":
        out = out + r_ref[0].astype(jnp.float32)
    elif shortcut == "conv":
        sc = jnp.dot(r_ref[0], ws_ref[...], preferred_element_type=jnp.float32)
        out = out + (sc * ss_ref[...] + bs_ref[...])
    o_ref[0] = out.astype(o_ref.dtype)


# ----------------------------------------------------------------------------
# Block forward (wrapper)
# ----------------------------------------------------------------------------
def block_forward(x_nchw, p, stride, in_planes, out_planes, *, tile_h_target=8):
    # TODO(synk): hoist these transposes by keeping the whole net in NHWC.
    x = jnp.transpose(x_nchw, (0, 2, 3, 1)).astype(jnp.float32)   # NCHW -> NHWC
    N, H, W, Cin = x.shape
    planes = p["w1"].shape[1]
    Cout = p["w3"].shape[1]

    H_out = (H - 1) // stride + 1
    W_out = (W - 1) // stride + 1
    tile_h = _pick_tile_h(H_out, tile_h_target)
    n_strips = H_out // tile_h
    th_in = (tile_h - 1) * stride + 3        # input rows per strip (with halo)
    wp = W + 2                               # padded width
    ns = N * n_strips

    s1, b1 = bn_fold(*p["bn1"])
    s2, b2 = bn_fold(*p["bn2"])
    s3, b3 = bn_fold(*p["bn3"])

    # Fold BN1 scale into w1; BN1 bias rides an extra all-ones channel (zero at
    # spatial padding) so pad pixels of the expanded activation are exactly 0.
    w1_aug = jnp.concatenate([p["w1"] * s1[None, :], b1[None, :]], axis=0)
    w1_aug = w1_aug.astype(jnp.bfloat16)                         # (Cin+1, planes)

    # Overlapping row strips of the zero-padded input, flattened to 2-D pixels.
    x_aug = jnp.concatenate([x, jnp.ones((N, H, W, 1), x.dtype)], axis=-1)
    xp = jnp.pad(x_aug, ((0, 0), (1, 1), (1, 1), (0, 0)))        # (N, H+2, W+2, Cin+1)
    row_idx = (jnp.arange(n_strips)[:, None] * (tile_h * stride)
               + jnp.arange(th_in)[None, :])                     # padded-H indices
    x_strips = xp[:, row_idx]                                    # (N, ns', th_in, wp, Cin+1)
    x_strips = x_strips.reshape(ns, th_in * wp, Cin + 1).astype(jnp.bfloat16)

    shortcut = "none"
    if stride == 1:
        shortcut = "identity" if in_planes == out_planes else "conv"

    kernel = functools.partial(_fused_block_kernel, stride=stride, tile_h=tile_h,
                               wp=wp, wo=W_out, shortcut=shortcut)

    def full2d(shape):
        return pl.BlockSpec(shape, lambda i: (0, 0))

    in_specs = [
        pl.BlockSpec((1, th_in * wp, Cin + 1), lambda i: (i, 0, 0)),
        full2d((Cin + 1, planes)),
        full2d((9, planes)),
        full2d((1, planes)), full2d((1, planes)),
        full2d((planes, Cout)),
        full2d((1, Cout)), full2d((1, Cout)),
    ]
    args = [
        x_strips, w1_aug,
        p["w2"].reshape(9, planes).astype(jnp.float32),
        s2.reshape(1, planes), b2.reshape(1, planes),
        p["w3"].astype(jnp.bfloat16),
        s3.reshape(1, Cout), b3.reshape(1, Cout),
    ]

    if shortcut != "none":
        # residual = the un-padded center pixels of each strip (stride == 1 here)
        res = x.reshape(N, n_strips, tile_h, W, Cin)
        res = res.reshape(ns, tile_h * W, Cin).astype(jnp.bfloat16)
        in_specs.append(pl.BlockSpec((1, tile_h * W, Cin), lambda i: (i, 0, 0)))
        args.append(res)
    if shortcut == "conv":
        ss, bs = bn_fold(*p["bns"])
        in_specs += [full2d((Cin, Cout)), full2d((1, Cout)), full2d((1, Cout))]
        args += [p["ws"].astype(jnp.bfloat16),
                 ss.reshape(1, Cout), bs.reshape(1, Cout)]

    out = pl.pallas_call(
        kernel,
        out_shape=jax.ShapeDtypeStruct((ns, tile_h * W_out, Cout), jnp.float32),
        grid=(ns,),
        in_specs=in_specs,
        out_specs=pl.BlockSpec((1, tile_h * W_out, Cout), lambda i: (i, 0, 0)),
        scratch_shapes=[pltpu.VMEM((tile_h * W_out, planes), jnp.bfloat16)],
        compiler_params=pltpu.CompilerParams(
            dimension_semantics=("parallel",),
            vmem_limit_bytes=32 * 1024 * 1024),
    )(*args)

    out = out.reshape(N, H_out, W_out, Cout)
    return jnp.transpose(out, (0, 3, 1, 2))                      # NHWC -> NCHW


# ----------------------------------------------------------------------------
# Pure-JAX reference (f32 math on the same bf16-rounded weights/activations)
# ----------------------------------------------------------------------------
def ref_forward(x_nchw, p, stride, in_planes, out_planes):
    q = lambda a: a.astype(jnp.bfloat16).astype(jnp.float32)      # bf16 rounding
    x = q(jnp.transpose(x_nchw, (0, 2, 3, 1)))
    planes = p["w1"].shape[1]
    s1, b1 = bn_fold(*p["bn1"])
    s2, b2 = bn_fold(*p["bn2"])
    s3, b3 = bn_fold(*p["bn3"])

    h = jnp.einsum("nhwc,cd->nhwd", x, q(p["w1"] * s1[None, :]),
                   precision="highest") + q(b1)
    h = jnp.maximum(h, 0.0)

    dw = p["w2"].reshape(3, 3, 1, planes)
    h = lax.conv_general_dilated(
        h, dw, (stride, stride), ((1, 1), (1, 1)),
        dimension_numbers=("NHWC", "HWIO", "NHWC"),
        feature_group_count=planes, precision=lax.Precision.HIGHEST)
    h = jnp.maximum(h * s2 + b2, 0.0)

    out = jnp.einsum("nhwc,cd->nhwd", h, q(p["w3"]), precision="highest") * s3 + b3
    if stride == 1:
        if in_planes == out_planes:
            out = out + x
        else:
            ss, bs = bn_fold(*p["bns"])
            out = out + (jnp.einsum("nhwc,cd->nhwd", x, q(p["ws"]),
                                    precision="highest") * ss + bs)
    return jnp.transpose(out, (0, 3, 1, 2))


# ----------------------------------------------------------------------------
# Demo
# ----------------------------------------------------------------------------
if __name__ == "__main__":
    key = jax.random.PRNGKey(0)

    def bn_params(k, c):
        k1, k2, k3, k4 = jax.random.split(k, 4)
        gamma = 1.0 + 0.1 * jax.random.normal(k1, (c,), jnp.float32)
        beta = 0.1 * jax.random.normal(k2, (c,), jnp.float32)
        mean = 0.1 * jax.random.normal(k3, (c,), jnp.float32)
        var = jnp.abs(jax.random.normal(k4, (c,), jnp.float32)) + 0.5
        return gamma, beta, mean, var

    def make_block_params(k, in_planes, out_planes, expansion, stride):
        planes = expansion * in_planes
        ks = jax.random.split(k, 8)
        p = dict(
            w1=0.2 * jax.random.normal(ks[0], (in_planes, planes), jnp.float32),
            bn1=bn_params(ks[1], planes),
            w2=0.2 * jax.random.normal(ks[2], (3, 3, planes), jnp.float32),
            bn2=bn_params(ks[3], planes),
            w3=0.2 * jax.random.normal(ks[4], (planes, out_planes), jnp.float32),
            bn3=bn_params(ks[5], out_planes),
        )
        if stride != 1 or in_planes != out_planes:
            p["ws"] = 0.2 * jax.random.normal(ks[6], (in_planes, out_planes),
                                              jnp.float32)
            p["bns"] = bn_params(ks[7], out_planes)
        return p

    N, H, W = 2, 16, 16
    configs = [
        # (in_planes, out_planes, expansion, stride)
        (8, 8, 4, 1),    # identity shortcut
        (8, 16, 4, 1),   # 1x1-conv shortcut (fused into projection)
        (8, 16, 4, 2),   # strided, no shortcut
    ]
    for cfg_i, (cin, cout, expansion, stride) in enumerate(configs):
        kx, kp, key = jax.random.split(key, 3)
        x = jax.random.normal(kx, (N, cin, H, W), jnp.float32)
        params = make_block_params(kp, cin, cout, expansion, stride)

        out = jax.block_until_ready(block_forward(x, params, stride, cin, cout))
        ref = ref_forward(x, params, stride, cin, cout)
        assert out.shape == ref.shape, (cfg_i, out.shape, ref.shape)
        max_err = float(jnp.max(jnp.abs(out - ref)))
        assert jnp.allclose(out, ref, atol=2e-2, rtol=2e-2), (cfg_i, max_err)

    print("KERNEL_OK")
</pallas_src>

<mosaic_0001>
module attributes {stable_mosaic.version = 11 : i64} {
  func.func @_fused_block_kernel(%arg0: i32, %arg1: memref<1x180x9xbf16, #tpu.memory_space<vmem>>, %arg2: memref<9x32xbf16, #tpu.memory_space<vmem>>, %arg3: memref<9x32xf32, #tpu.memory_space<vmem>>, %arg4: memref<1x32xf32, #tpu.memory_space<vmem>>, %arg5: memref<1x32xf32, #tpu.memory_space<vmem>>, %arg6: memref<32x8xbf16, #tpu.memory_space<vmem>>, %arg7: memref<1x8xf32, #tpu.memory_space<vmem>>, %arg8: memref<1x8xf32, #tpu.memory_space<vmem>>, %arg9: memref<1x128x8xbf16, #tpu.memory_space<vmem>>, %arg10: memref<1x128x8xf32, #tpu.memory_space<vmem>>, %arg11: memref<128x32xbf16, #tpu.memory_space<vmem>>) attributes {dimension_semantics = [#tpu.dimension_semantics<parallel>], iteration_bounds = array<i64: 4>, scalar_prefetch = 0 : i64, scratch_operands = 1 : i64, tpu.core_type = #tpu.core_type<tc>, window_params = [{transform_indices = @transform_0, window_bounds = array<i64: 1, 180, 9>}, {pipeline_mode = #tpu.pipeline_mode<synchronous>, transform_indices = @transform_1, window_bounds = array<i64: 9, 32>}, {pipeline_mode = #tpu.pipeline_mode<synchronous>, transform_indices = @transform_2, window_bounds = array<i64: 9, 32>}, {pipeline_mode = #tpu.pipeline_mode<synchronous>, transform_indices = @transform_3, window_bounds = array<i64: 1, 32>}, {pipeline_mode = #tpu.pipeline_mode<synchronous>, transform_indices = @transform_4, window_bounds = array<i64: 1, 32>}, {pipeline_mode = #tpu.pipeline_mode<synchronous>, transform_indices = @transform_5, window_bounds = array<i64: 32, 8>}, {pipeline_mode = #tpu.pipeline_mode<synchronous>, transform_indices = @transform_6, window_bounds = array<i64: 1, 8>}, {pipeline_mode = #tpu.pipeline_mode<synchronous>, transform_indices = @transform_7, window_bounds = array<i64: 1, 8>}, {transform_indices = @transform_8, window_bounds = array<i64: 1, 128, 8>}, {transform_indices = @transform_9, window_bounds = array<i64: 1, 128, 8>}]} {
    %c0 = arith.constant 0 : index
    %c0_0 = arith.constant 0 : index
    %c0_1 = arith.constant 0 : index
    %0 = vector.load %arg1[%c0, %c0_0, %c0_1] : memref<1x180x9xbf16, #tpu.memory_space<vmem>>, vector<1x180x9xbf16>
    %1 = vector.shape_cast %0 : vector<1x180x9xbf16> to vector<180x9xbf16>
    %c0_2 = arith.constant 0 : index
    %c0_3 = arith.constant 0 : index
    %2 = vector.load %arg2[%c0_2, %c0_3] : memref<9x32xbf16, #tpu.memory_space<vmem>>, vector<9x32xbf16>
    %cst = arith.constant dense<0.000000e+00> : vector<180x32xf32>
    %3 = tpu.matmul %1, %2, %cst {dimension_numbers = #tpu.dot_dimension_numbers<[1], [0], [0], [1], [0, 0, 1, 1], [], []>} : vector<180x9xbf16>, vector<9x32xbf16>, vector<180x32xf32> -> vector<180x32xf32>
    %cst_4 = arith.constant 0.000000e+00 : f32
    %4 = vector.broadcast %cst_4 : f32 to vector<180x32xf32>
    %5 = arith.maximumf %3, %4 : vector<180x32xf32>
    %c0_5 = arith.constant 0 : index
    %c0_6 = arith.constant 0 : index
    %6 = vector.load %arg3[%c0_5, %c0_6] : memref<9x32xf32, #tpu.memory_space<vmem>>, vector<9x32xf32>
    %c0_7 = arith.constant 0 : index
    %c0_8 = arith.constant 0 : index
    %7 = vector.load %arg4[%c0_7, %c0_8] : memref<1x32xf32, #tpu.memory_space<vmem>>, vector<1x32xf32>
    %c0_9 = arith.constant 0 : index
    %c0_10 = arith.constant 0 : index
    %8 = vector.load %arg5[%c0_9, %c0_10] : memref<1x32xf32, #tpu.memory_space<vmem>>, vector<1x32xf32>
    %cst_11 = arith.constant 0.000000e+00 : f32
    %9 = vector.broadcast %cst_11 : f32 to vector<16x32xf32>
    %10 = vector.extract_strided_slice %5 {offsets = [0, 0], sizes = [16, 32], strides = [1, 1]} : vector<180x32xf32> to vector<16x32xf32>
    %11 = vector.extract_strided_slice %6 {offsets = [0, 0], sizes = [1, 32], strides = [1, 1]} : vector<9x32xf32> to vector<1x32xf32>
    %12 = vector.broadcast %11 : vector<1x32xf32> to vector<16x32xf32>
    %13 = arith.mulf %10, %12 : vector<16x32xf32>
    %14 = arith.addf %9, %13 : vector<16x32xf32>
    %15 = vector.extract_strided_slice %5 {offsets = [1, 0], sizes = [16, 32], strides = [1, 1]} : vector<180x32xf32> to vector<16x32xf32>
    %16 = vector.extract_strided_slice %6 {offsets = [1, 0], sizes = [1, 32], strides = [1, 1]} : vector<9x32xf32> to vector<1x32xf32>
    %17 = vector.broadcast %16 : vector<1x32xf32> to vector<16x32xf32>
    %18 = arith.mulf %15, %17 : vector<16x32xf32>
    %19 = arith.addf %14, %18 : vector<16x32xf32>
    %20 = vector.extract_strided_slice %5 {offsets = [2, 0], sizes = [16, 32], strides = [1, 1]} : vector<180x32xf32> to vector<16x32xf32>
    %21 = vector.extract_strided_slice %6 {offsets = [2, 0], sizes = [1, 32], strides = [1, 1]} : vector<9x32xf32> to vector<1x32xf32>
    %22 = vector.broadcast %21 : vector<1x32xf32> to vector<16x32xf32>
    %23 = arith.mulf %20, %22 : vector<16x32xf32>
    %24 = arith.addf %19, %23 : vector<16x32xf32>
    %25 = vector.extract_strided_slice %5 {offsets = [18, 0], sizes = [16, 32], strides = [1, 1]} : vector<180x32xf32> to vector<16x32xf32>
    %26 = vector.extract_strided_slice %6 {offsets = [3, 0], sizes = [1, 32], strides = [1, 1]} : vector<9x32xf32> to vector<1x32xf32>
    %27 = vector.broadcast %26 : vector<1x32xf32> to vector<16x32xf32>
    %28 = arith.mulf %25, %27 : vector<16x32xf32>
    %29 = arith.addf %24, %28 : vector<16x32xf32>
    %30 = vector.extract_strided_slice %5 {offsets = [19, 0], sizes = [16, 32], strides = [1, 1]} : vector<180x32xf32> to vector<16x32xf32>
    %31 = vector.extract_strided_slice %6 {offsets = [4, 0], sizes = [1, 32], strides = [1, 1]} : vector<9x32xf32> to vector<1x32xf32>
    %32 = vector.broadcast %31 : vector<1x32xf32> to vector<16x32xf32>
    %33 = arith.mulf %30, %32 : vector<16x32xf32>
    %34 = arith.addf %29, %33 : vector<16x32xf32>
    %35 = vector.extract_strided_slice %5 {offsets = [20, 0], sizes = [16, 32], strides = [1, 1]} : vector<180x32xf32> to vector<16x32xf32>
    %36 = vector.extract_strided_slice %6 {offsets = [5, 0], sizes = [1, 32], strides = [1, 1]} : vector<9x32xf32> to vector<1x32xf32>
    %37 = vector.broadcast %36 : vector<1x32xf32> to vector<16x32xf32>
    %38 = arith.mulf %35, %37 : vector<16x32xf32>
    %39 = arith.addf %34, %38 : vector<16x32xf32>
    %40 = vector.extract_strided_slice %5 {offsets = [36, 0], sizes = [16, 32], strides = [1, 1]} : vector<180x32xf32> to vector<16x32xf32>
    %41 = vector.extract_strided_slice %6 {offsets = [6, 0], sizes = [1, 32], strides = [1, 1]} : vector<9x32xf32> to vector<1x32xf32>
    %42 = vector.broadcast %41 : vector<1x32xf32> to vector<16x32xf32>
    %43 = arith.mulf %40, %42 : vector<16x32xf32>
    %44 = arith.addf %39, %43 : vector<16x32xf32>
    %45 = vector.extract_strided_slice %5 {offsets = [37, 0], sizes = [16, 32], strides = [1, 1]} : vector<180x32xf32> to vector<16x32xf32>
    %46 = vector.extract_strided_slice %6 {offsets = [7, 0], sizes = [1, 32], strides = [1, 1]} : vector<9x32xf32> to vector<1x32xf32>
    %47 = vector.broadcast %46 : vector<1x32xf32> to vector<16x32xf32>
    %48 = arith.mulf %45, %47 : vector<16x32xf32>
    %49 = arith.addf %44, %48 : vector<16x32xf32>
    %50 = vector.extract_strided_slice %5 {offsets = [38, 0], sizes = [16, 32], strides = [1, 1]} : vector<180x32xf32> to vector<16x32xf32>
    %51 = vector.extract_strided_slice %6 {offsets = [8, 0], sizes = [1, 32], strides = [1, 1]} : vector<9x32xf32> to vector<1x32xf32>
    %52 = vector.broadcast %51 : vector<1x32xf32> to vector<16x32xf32>
    %53 = arith.mulf %50, %52 : vector<16x32xf32>
    %54 = arith.addf %49, %53 : vector<16x32xf32>
    %55 = vector.broadcast %7 : vector<1x32xf32> to vector<16x32xf32>
    %56 = arith.mulf %54, %55 : vector<16x32xf32>
    %57 = vector.broadcast %8 : vector<1x32xf32> to vector<16x32xf32>
    %58 = arith.addf %56, %57 : vector<16x32xf32>
    %cst_12 = arith.constant 0.000000e+00 : f32
    %59 = vector.broadcast %cst_12 : f32 to vector<16x32xf32>
    %60 = arith.maximumf %58, %59 : vector<16x32xf32>
    %61 = arith.truncf %60 : vector<16x32xf32> to vector<16x32xbf16>
    %c0_13 = arith.constant 0 : index
    %c0_14 = arith.constant 0 : index
    %62 = vector.load %arg11[%c0_13, %c0_14] : memref<128x32xbf16, #tpu.memory_space<vmem>>, vector<16x32xbf16>
    tpu.vector_store %arg11[%c0_13, %c0_14], %61 {strides = array<i32>} : memref<128x32xbf16, #tpu.memory_space<vmem>>, vector<16x32xbf16>,
    %cst_15 = arith.constant 0.000000e+00 : f32
    %63 = vector.broadcast %cst_15 : f32 to vector<16x32xf32>
    %64 = vector.extract_strided_slice %5 {offsets = [18, 0], sizes = [16, 32], strides = [1, 1]} : vector<180x32xf32> to vector<16x32xf32>
    %65 = vector.extract_strided_slice %6 {offsets = [0, 0], sizes = [1, 32], strides = [1, 1]} : vector<9x32xf32> to vector<1x32xf32>
    %66 = vector.broadcast %65 : vector<1x32xf32> to vector<16x32xf32>
    %67 = arith.mulf %64, %66 : vector<16x32xf32>
    %68 = arith.addf %63, %67 : vector<16x32xf32>
    %69 = vector.extract_strided_slice %5 {offsets = [19, 0], sizes = [16, 32], strides = [1, 1]} : vector<180x32xf32> to vector<16x32xf32>
    %70 = vector.extract_strided_slice %6 {offsets = [1, 0], sizes = [1, 32], strides = [1, 1]} : vector<9x32xf32> to vector<1x32xf32>
    %71 = vector.broadcast %70 : vector<1x32xf32> to vector<16x32xf32>
    %72 = arith.mulf %69, %71 : vector<16x32xf32>
    %73 = arith.addf %68, %72 : vector<16x32xf32>
    %74 = vector.extract_strided_slice %5 {offsets = [20, 0], sizes = [16, 32], strides = [1, 1]} : vector<180x32xf32> to vector<16x32xf32>
    %75 = vector.extract_strided_slice %6 {offsets = [2, 0], sizes = [1, 32], strides = [1, 1]} : vector<9x32xf32> to vector<1x32xf32>
    %76 = vector.broadcast %75 : vector<1x32xf32> to vector<16x32xf32>
    %77 = arith.mulf %74, %76 : vector<16x32xf32>
    %78 = arith.addf %73, %77 : vector<16x32xf32>
    %79 = vector.extract_strided_slice %5 {offsets = [36, 0], sizes = [16, 32], strides = [1, 1]} : vector<180x32xf32> to vector<16x32xf32>
    %80 = vector.extract_strided_slice %6 {offsets = [3, 0], sizes = [1, 32], strides = [1, 1]} : vector<9x32xf32> to vector<1x32xf32>
    %81 = vector.broadcast %80 : vector<1x32xf32> to vector<16x32xf32>
    %82 = arith.mulf %79, %81 : vector<16x32xf32>
    %83 = arith.addf %78, %82 : vector<16x32xf32>
    %84 = vector.extract_strided_slice %5 {offsets = [37, 0], sizes = [16, 32], strides = [1, 1]} : vector<180x32xf32> to vector<16x32xf32>
    %85 = vector.extract_strided_slice %6 {offsets = [4, 0], sizes = [1, 32], strides = [1, 1]} : vector<9x32xf32> to vector<1x32xf32>
    %86 = vector.broadcast %85 : vector<1x32xf32> to vector<16x32xf32>
    %87 = arith.mulf %84, %86 : vector<16x32xf32>
    %88 = arith.addf %83, %87 : vector<16x32xf32>
    %89 = vector.extract_strided_slice %5 {offsets = [38, 0], sizes = [16, 32], strides = [1, 1]} : vector<180x32xf32> to vector<16x32xf32>
    %90 = vector.extract_strided_slice %6 {offsets = [5, 0], sizes = [1, 32], strides = [1, 1]} : vector<9x32xf32> to vector<1x32xf32>
    %91 = vector.broadcast %90 : vector<1x32xf32> to vector<16x32xf32>
    %92 = arith.mulf %89, %91 : vector<16x32xf32>
    %93 = arith.addf %88, %92 : vector<16x32xf32>
    %94 = vector.extract_strided_slice %5 {offsets = [54, 0], sizes = [16, 32], strides = [1, 1]} : vector<180x32xf32> to vector<16x32xf32>
    %95 = vector.extract_strided_slice %6 {offsets = [6, 0], sizes = [1, 32], strides = [1, 1]} : vector<9x32xf32> to vector<1x32xf32>
    %96 = vector.broadcast %95 : vector<1x32xf32> to vector<16x32xf32>
    %97 = arith.mulf %94, %96 : vector<16x32xf32>
    %98 = arith.addf %93, %97 : vector<16x32xf32>
    %99 = vector.extract_strided_slice %5 {offsets = [55, 0], sizes = [16, 32], strides = [1, 1]} : vector<180x32xf32> to vector<16x32xf32>
    %100 = vector.extract_strided_slice %6 {offsets = [7, 0], sizes = [1, 32], strides = [1, 1]} : vector<9x32xf32> to vector<1x32xf32>
    %101 = vector.broadcast %100 : vector<1x32xf32> to vector<16x32xf32>
    %102 = arith.mulf %99, %101 : vector<16x32xf32>
    %103 = arith.addf %98, %102 : vector<16x32xf32>
    %104 = vector.extract_strided_slice %5 {offsets = [56, 0], sizes = [16, 32], strides = [1, 1]} : vector<180x32xf32> to vector<16x32xf32>
    %105 = vector.extract_strided_slice %6 {offsets = [8, 0], sizes = [1, 32], strides = [1, 1]} : vector<9x32xf32> to vector<1x32xf32>
    %106 = vector.broadcast %105 : vector<1x32xf32> to vector<16x32xf32>
    %107 = arith.mulf %104, %106 : vector<16x32xf32>
    %108 = arith.addf %103, %107 : vector<16x32xf32>
    %109 = vector.broadcast %7 : vector<1x32xf32> to vector<16x32xf32>
    %110 = arith.mulf %108, %109 : vector<16x32xf32>
    %111 = vector.broadcast %8 : vector<1x32xf32> to vector<16x32xf32>
    %112 = arith.addf %110, %111 : vector<16x32xf32>
    %cst_16 = arith.constant 0.000000e+00 : f32
    %113 = vector.broadcast %cst_16 : f32 to vector<16x32xf32>
    %114 = arith.maximumf %112, %113 : vector<16x32xf32>
    %115 = arith.truncf %114 : vector<16x32xf32> to vector<16x32xbf16>
    %c16 = arith.constant 16 : index
    %c0_17 = arith.constant 0 : index
    %116 = vector.load %arg11[%c16, %c0_17] : memref<128x32xbf16, #tpu.memory_space<vmem>>, vector<16x32xbf16>
    tpu.vector_store %arg11[%c16, %c0_17], %115 {strides = array<i32>} : memref<128x32xbf16, #tpu.memory_space<vmem>>, vector<16x32xbf16>,
    %cst_18 = arith.constant 0.000000e+00 : f32
    %117 = vector.broadcast %cst_18 : f32 to vector<16x32xf32>
    %118 = vector.extract_strided_slice %5 {offsets = [36, 0], sizes = [16, 32], strides = [1, 1]} : vector<180x32xf32> to vector<16x32xf32>
    %119 = vector.extract_strided_slice %6 {offsets = [0, 0], sizes = [1, 32], strides = [1, 1]} : vector<9x32xf32> to vector<1x32xf32>
    %120 = vector.broadcast %119 : vector<1x32xf32> to vector<16x32xf32>
    %121 = arith.mulf %118, %120 : vector<16x32xf32>
    %122 = arith.addf %117, %121 : vector<16x32xf32>
    %123 = vector.extract_strided_slice %5 {offsets = [37, 0], sizes = [16, 32], strides = [1, 1]} : vector<180x32xf32> to vector<16x32xf32>
    %124 = vector.extract_strided_slice %6 {offsets = [1, 0], sizes = [1, 32], strides = [1, 1]} : vector<9x32xf32> to vector<1x32xf32>
    %125 = vector.broadcast %124 : vector<1x32xf32> to vector<16x32xf32>
    %126 = arith.mulf %123, %125 : vector<16x32xf32>
    %127 = arith.addf %122, %126 : vector<16x32xf32>
    %128 = vector.extract_strided_slice %5 {offsets = [38, 0], sizes = [16, 32], strides = [1, 1]} : vector<180x32xf32> to vector<16x32xf32>
    %129 = vector.extract_strided_slice %6 {offsets = [2, 0], sizes = [1, 32], strides = [1, 1]} : vector<9x32xf32> to vector<1x32xf32>
    %130 = vector.broadcast %129 : vector<1x32xf32> to vector<16x32xf32>
    %131 = arith.mulf %128, %130 : vector<16x32xf32>
    %132 = arith.addf %127, %131 : vector<16x32xf32>
    %133 = vector.extract_strided_slice %5 {offsets = [54, 0], sizes = [16, 32], strides = [1, 1]} : vector<180x32xf32> to vector<16x32xf32>
    %134 = vector.extract_strided_slice %6 {offsets = [3, 0], sizes = [1, 32], strides = [1, 1]} : vector<9x32xf32> to vector<1x32xf32>
    %135 = vector.broadcast %134 : vector<1x32xf32> to vector<16x32xf32>
    %136 = arith.mulf %133, %135 : vector<16x32xf32>
    %137 = arith.addf %132, %136 : vector<16x32xf32>
    %138 = vector.extract_strided_slice %5 {offsets = [55, 0], sizes = [16, 32], strides = [1, 1]} : vector<180x32xf32> to vector<16x32xf32>
    %139 = vector.extract_strided_slice %6 {offsets = [4, 0], sizes = [1, 32], strides = [1, 1]} : vector<9x32xf32> to vector<1x32xf32>
    %140 = vector.broadcast %139 : vector<1x32xf32> to vector<16x32xf32>
    %141 = arith.mulf %138, %140 : vector<16x32xf32>
    %142 = arith.addf %137, %141 : vector<16x32xf32>
    %143 = vector.extract_strided_slice %5 {offsets = [56, 0], sizes = [16, 32], strides = [1, 1]} : vector<180x32xf32> to vector<16x32xf32>
    %144 = vector.extract_strided_slice %6 {offsets = [5, 0], sizes = [1, 32], strides = [1, 1]} : vector<9x32xf32> to vector<1x32xf32>
    %145 = vector.broadcast %144 : vector<1x32xf32> to vector<16x32xf32>
    %146 = arith.mulf %143, %145 : vector<16x32xf32>
    %147 = arith.addf %142, %146 : vector<16x32xf32>
    %148 = vector.extract_strided_slice %5 {offsets = [72, 0], sizes = [16, 32], strides = [1, 1]} : vector<180x32xf32> to vector<16x32xf32>
    %149 = vector.extract_strided_slice %6 {offsets = [6, 0], sizes = [1, 32], strides = [1, 1]} : vector<9x32xf32> to vector<1x32xf32>
    %150 = vector.broadcast %149 : vector<1x32xf32> to vector<16x32xf32>
    %151 = arith.mulf %148, %150 : vector<16x32xf32>
    %152 = arith.addf %147, %151 : vector<16x32xf32>
    %153 = vector.extract_strided_slice %5 {offsets = [73, 0], sizes = [16, 32], strides = [1, 1]} : vector<180x32xf32> to vector<16x32xf32>
    %154 = vector.extract_strided_slice %6 {offsets = [7, 0], sizes = [1, 32], strides = [1, 1]} : vector<9x32xf32> to vector<1x32xf32>
    %155 = vector.broadcast %154 : vector<1x32xf32> to vector<16x32xf32>
    %156 = arith.mulf %153, %155 : vector<16x32xf32>
    %157 = arith.addf %152, %156 : vector<16x32xf32>
    %158 = vector.extract_strided_slice %5 {offsets = [74, 0], sizes = [16, 32], strides = [1, 1]} : vector<180x32xf32> to vector<16x32xf32>
    %159 = vector.extract_strided_slice %6 {offsets = [8, 0], sizes = [1, 32], strides = [1, 1]} : vector<9x32xf32> to vector<1x32xf32>
    %160 = vector.broadcast %159 : vector<1x32xf32> to vector<16x32xf32>
    %161 = arith.mulf %158, %160 : vector<16x32xf32>
    %162 = arith.addf %157, %161 : vector<16x32xf32>
    %163 = vector.broadcast %7 : vector<1x32xf32> to vector<16x32xf32>
    %164 = arith.mulf %162, %163 : vector<16x32xf32>
    %165 = vector.broadcast %8 : vector<1x32xf32> to vector<16x32xf32>
    %166 = arith.addf %164, %165 : vector<16x32xf32>
    %cst_19 = arith.constant 0.000000e+00 : f32
    %167 = vector.broadcast %cst_19 : f32 to vector<16x32xf32>
    %168 = arith.maximumf %166, %167 : vector<16x32xf32>
    %169 = arith.truncf %168 : vector<16x32xf32> to vector<16x32xbf16>
    %c32 = arith.constant 32 : index
    %c0_20 = arith.constant 0 : index
    %170 = vector.load %arg11[%c32, %c0_20] : memref<128x32xbf16, #tpu.memory_space<vmem>>, vector<16x32xbf16>
    tpu.vector_store %arg11[%c32, %c0_20], %169 {strides = array<i32>} : memref<128x32xbf16, #tpu.memory_space<vmem>>, vector<16x32xbf16>,
    %cst_21 = arith.constant 0.000000e+00 : f32
    %171 = vector.broadcast %cst_21 : f32 to vector<16x32xf32>
    %172 = vector.extract_strided_slice %5 {offsets = [54, 0], sizes = [16, 32], strides = [1, 1]} : vector<180x32xf32> to vector<16x32xf32>
    %173 = vector.extract_strided_slice %6 {offsets = [0, 0], sizes = [1, 32], strides = [1, 1]} : vector<9x32xf32> to vector<1x32xf32>
    %174 = vector.broadcast %173 : vector<1x32xf32> to vector<16x32xf32>
    %175 = arith.mulf %172, %174 : vector<16x32xf32>
    %176 = arith.addf %171, %175 : vector<16x32xf32>
    %177 = vector.extract_strided_slice %5 {offsets = [55, 0], sizes = [16, 32], strides = [1, 1]} : vector<180x32xf32> to vector<16x32xf32>
    %178 = vector.extract_strided_slice %6 {offsets = [1, 0], sizes = [1, 32], strides = [1, 1]} : vector<9x32xf32> to vector<1x32xf32>
    %179 = vector.broadcast %178 : vector<1x32xf32> to vector<16x32xf32>
    %180 = arith.mulf %177, %179 : vector<16x32xf32>
    %181 = arith.addf %176, %180 : vector<16x32xf32>
    %182 = vector.extract_strided_slice %5 {offsets = [56, 0], sizes = [16, 32], strides = [1, 1]} : vector<180x32xf32> to vector<16x32xf32>
    %183 = vector.extract_strided_slice %6 {offsets = [2, 0], sizes = [1, 32], strides = [1, 1]} : vector<9x32xf32> to vector<1x32xf32>
    %184 = vector.broadcast %183 : vector<1x32xf32> to vector<16x32xf32>
    %185 = arith.mulf %182, %184 : vector<16x32xf32>
    %186 = arith.addf %181, %185 : vector<16x32xf32>
    %187 = vector.extract_strided_slice %5 {offsets = [72, 0], sizes = [16, 32], strides = [1, 1]} : vector<180x32xf32> to vector<16x32xf32>
    %188 = vector.extract_strided_slice %6 {offsets = [3, 0], sizes = [1, 32], strides = [1, 1]} : vector<9x32xf32> to vector<1x32xf32>
    %189 = vector.broadcast %188 : vector<1x32xf32> to vector<16x32xf32>
    %190 = arith.mulf %187, %189 : vector<16x32xf32>
    %191 = arith.addf %186, %190 : vector<16x32xf32>
    %192 = vector.extract_strided_slice %5 {offsets = [73, 0], sizes = [16, 32], strides = [1, 1]} : vector<180x32xf32> to vector<16x32xf32>
    %193 = vector.extract_strided_slice %6 {offsets = [4, 0], sizes = [1, 32], strides = [1, 1]} : vector<9x32xf32> to vector<1x32xf32>
    %194 = vector.broadcast %193 : vector<1x32xf32> to vector<16x32xf32>
    %195 = arith.mulf %192, %194 : vector<16x32xf32>
    %196 = arith.addf %191, %195 : vector<16x32xf32>
    %197 = vector.extract_strided_slice %5 {offsets = [74, 0], sizes = [16, 32], strides = [1, 1]} : vector<180x32xf32> to vector<16x32xf32>
    %198 = vector.extract_strided_slice %6 {offsets = [5, 0], sizes = [1, 32], strides = [1, 1]} : vector<9x32xf32> to vector<1x32xf32>
    %199 = vector.broadcast %198 : vector<1x32xf32> to vector<16x32xf32>
    %200 = arith.mulf %197, %199 : vector<16x32xf32>
    %201 = arith.addf %196, %200 : vector<16x32xf32>
    %202 = vector.extract_strided_slice %5 {offsets = [90, 0], sizes = [16, 32], strides = [1, 1]} : vector<180x32xf32> to vector<16x32xf32>
    %203 = vector.extract_strided_slice %6 {offsets = [6, 0], sizes = [1, 32], strides = [1, 1]} : vector<9x32xf32> to vector<1x32xf32>
    %204 = vector.broadcast %203 : vector<1x32xf32> to vector<16x32xf32>
    %205 = arith.mulf %202, %204 : vector<16x32xf32>
    %206 = arith.addf %201, %205 : vector<16x32xf32>
    %207 = vector.extract_strided_slice %5 {offsets = [91, 0], sizes = [16, 32], strides = [1, 1]} : vector<180x32xf32> to vector<16x32xf32>
    %208 = vector.extract_strided_slice %6 {offsets = [7, 0], sizes = [1, 32], strides = [1, 1]} : vector<9x32xf32> to vector<1x32xf32>
    %209 = vector.broadcast %208 : vector<1x32xf32> to vector<16x32xf32>
    %210 = arith.mulf %207, %209 : vector<16x32xf32>
    %211 = arith.addf %206, %210 : vector<16x32xf32>
    %212 = vector.extract_strided_slice %5 {offsets = [92, 0], sizes = [16, 32], strides = [1, 1]} : vector<180x32xf32> to vector<16x32xf32>
    %213 = vector.extract_strided_slice %6 {offsets = [8, 0], sizes = [1, 32], strides = [1, 1]} : vector<9x32xf32> to vector<1x32xf32>
    %214 = vector.broadcast %213 : vector<1x32xf32> to vector<16x32xf32>
    %215 = arith.mulf %212, %214 : vector<16x32xf32>
    %216 = arith.addf %211, %215 : vector<16x32xf32>
    %217 = vector.broadcast %7 : vector<1x32xf32> to vector<16x32xf32>
    %218 = arith.mulf %216, %217 : vector<16x32xf32>
    %219 = vector.broadcast %8 : vector<1x32xf32> to vector<16x32xf32>
    %220 = arith.addf %218, %219 : vector<16x32xf32>
    %cst_22 = arith.constant 0.000000e+00 : f32
    %221 = vector.broadcast %cst_22 : f32 to vector<16x32xf32>
    %222 = arith.maximumf %220, %221 : vector<16x32xf32>
    %223 = arith.truncf %222 : vector<16x32xf32> to vector<16x32xbf16>
    %c48 = arith.constant 48 : index
    %c0_23 = arith.constant 0 : index
    %224 = vector.load %arg11[%c48, %c0_23] : memref<128x32xbf16, #tpu.memory_space<vmem>>, vector<16x32xbf16>
    tpu.vector_store %arg11[%c48, %c0_23], %223 {strides = array<i32>} : memref<128x32xbf16, #tpu.memory_space<vmem>>, vector<16x32xbf16>,
    %cst_24 = arith.constant 0.000000e+00 : f32
    %225 = vector.broadcast %cst_24 : f32 to vector<16x32xf32>
    %226 = vector.extract_strided_slice %5 {offsets = [72, 0], sizes = [16, 32], strides = [1, 1]} : vector<180x32xf32> to vector<16x32xf32>
    %227 = vector.extract_strided_slice %6 {offsets = [0, 0], sizes = [1, 32], strides = [1, 1]} : vector<9x32xf32> to vector<1x32xf32>
    %228 = vector.broadcast %227 : vector<1x32xf32> to vector<16x32xf32>
    %229 = arith.mulf %226, %228 : vector<16x32xf32>
    %230 = arith.addf %225, %229 : vector<16x32xf32>
    %231 = vector.extract_strided_slice %5 {offsets = [73, 0], sizes = [16, 32], strides = [1, 1]} : vector<180x32xf32> to vector<16x32xf32>
    %232 = vector.extract_strided_slice %6 {offsets = [1, 0], sizes = [1, 32], strides = [1, 1]} : vector<9x32xf32> to vector<1x32xf32>
    %233 = vector.broadcast %232 : vector<1x32xf32> to vector<16x32xf32>
    %234 = arith.mulf %231, %233 : vector<16x32xf32>
    %235 = arith.addf %230, %234 : vector<16x32xf32>
    %236 = vector.extract_strided_slice %5 {offsets = [74, 0], sizes = [16, 32], strides = [1, 1]} : vector<180x32xf32> to vector<16x32xf32>
    %237 = vector.extract_strided_slice %6 {offsets = [2, 0], sizes = [1, 32], strides = [1, 1]} : vector<9x32xf32> to vector<1x32xf32>
    %238 = vector.broadcast %237 : vector<1x32xf32> to vector<16x32xf32>
    %239 = arith.mulf %236, %238 : vector<16x32xf32>
    %240 = arith.addf %235, %239 : vector<16x32xf32>
    %241 = vector.extract_strided_slice %5 {offsets = [90, 0], sizes = [16, 32], strides = [1, 1]} : vector<180x32xf32> to vector<16x32xf32>
    %242 = vector.extract_strided_slice %6 {offsets = [3, 0], sizes = [1, 32], strides = [1, 1]} : vector<9x32xf32> to vector<1x32xf32>
    %243 = vector.broadcast %242 : vector<1x32xf32> to vector<16x32xf32>
    %244 = arith.mulf %241, %243 : vector<16x32xf32>
    %245 = arith.addf %240, %244 : vector<16x32xf32>
    %246 = vector.extract_strided_slice %5 {offsets = [91, 0], sizes = [16, 32], strides = [1, 1]} : vector<180x32xf32> to vector<16x32xf32>
    %247 = vector.extract_strided_slice %6 {offsets = [4, 0], sizes = [1, 32], strides = [1, 1]} : vector<9x32xf32> to vector<1x32xf32>
    %248 = vector.broadcast %247 : vector<1x32xf32> to vector<16x32xf32>
    %249 = arith.mulf %246, %248 : vector<16x32xf32>
    %250 = arith.addf %245, %249 : vector<16x32xf32>
    %251 = vector.extract_strided_slice %5 {offsets = [92, 0], sizes = [16, 32], strides = [1, 1]} : vector<180x32xf32> to vector<16x32xf32>
    %252 = vector.extract_strided_slice %6 {offsets = [5, 0], sizes = [1, 32], strides = [1, 1]} : vector<9x32xf32> to vector<1x32xf32>
    %253 = vector.broadcast %252 : vector<1x32xf32> to vector<16x32xf32>
    %254 = arith.mulf %251, %253 : vector<16x32xf32>
    %255 = arith.addf %250, %254 : vector<16x32xf32>
    %256 = vector.extract_strided_slice %5 {offsets = [108, 0], sizes = [16, 32], strides = [1, 1]} : vector<180x32xf32> to vector<16x32xf32>
    %257 = vector.extract_strided_slice %6 {offsets = [6, 0], sizes = [1, 32], strides = [1, 1]} : vector<9x32xf32> to vector<1x32xf32>
    %258 = vector.broadcast %257 : vector<1x32xf32> to vector<16x32xf32>
    %259 = arith.mulf %256, %258 : vector<16x32xf32>
    %260 = arith.addf %255, %259 : vector<16x32xf32>
    %261 = vector.extract_strided_slice %5 {offsets = [109, 0], sizes = [16, 32], strides = [1, 1]} : vector<180x32xf32> to vector<16x32xf32>
    %262 = vector.extract_strided_slice %6 {offsets = [7, 0], sizes = [1, 32], strides = [1, 1]} : vector<9x32xf32> to vector<1x32xf32>
    %263 = vector.broadcast %262 : vector<1x32xf32> to vector<16x32xf32>
    %264 = arith.mulf %261, %263 : vector<16x32xf32>
    %265 = arith.addf %260, %264 : vector<16x32xf32>
    %266 = vector.extract_strided_slice %5 {offsets = [110, 0], sizes = [16, 32], strides = [1, 1]} : vector<180x32xf32> to vector<16x32xf32>
    %267 = vector.extract_strided_slice %6 {offsets = [8, 0], sizes = [1, 32], strides = [1, 1]} : vector<9x32xf32> to vector<1x32xf32>
    %268 = vector.broadcast %267 : vector<1x32xf32> to vector<16x32xf32>
    %269 = arith.mulf %266, %268 : vector<16x32xf32>
    %270 = arith.addf %265, %269 : vector<16x32xf32>
    %271 = vector.broadcast %7 : vector<1x32xf32> to vector<16x32xf32>
    %272 = arith.mulf %270, %271 : vector<16x32xf32>
    %273 = vector.broadcast %8 : vector<1x32xf32> to vector<16x32xf32>
    %274 = arith.addf %272, %273 : vector<16x32xf32>
    %cst_25 = arith.constant 0.000000e+00 : f32
    %275 = vector.broadcast %cst_25 : f32 to vector<16x32xf32>
    %276 = arith.maximumf %274, %275 : vector<16x32xf32>
    %277 = arith.truncf %276 : vector<16x32xf32> to vector<16x32xbf16>
    %c64 = arith.constant 64 : index
    %c0_26 = arith.constant 0 : index
    %278 = vector.load %arg11[%c64, %c0_26] : memref<128x32xbf16, #tpu.memory_space<vmem>>, vector<16x32xbf16>
    tpu.vector_store %arg11[%c64, %c0_26], %277 {strides = array<i32>} : memref<128x32xbf16, #tpu.memory_space<vmem>>, vector<16x32xbf16>,
    %cst_27 = arith.constant 0.000000e+00 : f32
    %279 = vector.broadcast %cst_27 : f32 to vector<16x32xf32>
    %280 = vector.extract_strided_slice %5 {offsets = [90, 0], sizes = [16, 32], strides = [1, 1]} : vector<180x32xf32> to vector<16x32xf32>
    %281 = vector.extract_strided_slice %6 {offsets = [0, 0], sizes = [1, 32], strides = [1, 1]} : vector<9x32xf32> to vector<1x32xf32>
    %282 = vector.broadcast %281 : vector<1x32xf32> to vector<16x32xf32>
    %283 = arith.mulf %280, %282 : vector<16x32xf32>
    %284 = arith.addf %279, %283 : vector<16x32xf32>
    %285 = vector.extract_strided_slice %5 {offsets = [91, 0], sizes = [16, 32], strides = [1, 1]} : vector<180x32xf32> to vector<16x32xf32>
    %286 = vector.extract_strided_slice %6 {offsets = [1, 0], sizes = [1, 32], strides = [1, 1]} : vector<9x32xf32> to vector<1x32xf32>
    %287 = vector.broadcast %286 : vector<1x32xf32> to vector<16x32xf32>
    %288 = arith.mulf %285, %287 : vector<16x32xf32>
    %289 = arith.addf %284, %288 : vector<16x32xf32>
    %290 = vector.extract_strided_slice %5 {offsets = [92, 0], sizes = [16, 32], strides = [1, 1]} : vector<180x32xf32> to vector<16x32xf32>
    %291 = vector.extract_strided_slice %6 {offsets = [2, 0], sizes = [1, 32], strides = [1, 1]} : vector<9x32xf32> to vector<1x32xf32>
    %292 = vector.broadcast %291 : vector<1x32xf32> to vector<16x32xf32>
    %293 = arith.mulf %290, %292 : vector<16x32xf32>
    %294 = arith.addf %289, %293 : vector<16x32xf32>
    %295 = vector.extract_strided_slice %5 {offsets = [108, 0], sizes = [16, 32], strides = [1, 1]} : vector<180x32xf32> to vector<16x32xf32>
    %296 = vector.extract_strided_slice %6 {offsets = [3, 0], sizes = [1, 32], strides = [1, 1]} : vector<9x32xf32> to vector<1x32xf32>
    %297 = vector.broadcast %296 : vector<1x32xf32> to vector<16x32xf32>
    %298 = arith.mulf %295, %297 : vector<16x32xf32>
    %299 = arith.addf %294, %298 : vector<16x32xf32>
    %300 = vector.extract_strided_slice %5 {offsets = [109, 0], sizes = [16, 32], strides = [1, 1]} : vector<180x32xf32> to vector<16x32xf32>
    %301 = vector.extract_strided_slice %6 {offsets = [4, 0], sizes = [1, 32], strides = [1, 1]} : vector<9x32xf32> to vector<1x32xf32>
    %302 = vector.broadcast %301 : vector<1x32xf32> to vector<16x32xf32>
    %303 = arith.mulf %300, %302 : vector<16x32xf32>
    %304 = arith.addf %299, %303 : vector<16x32xf32>
    %305 = vector.extract_strided_slice %5 {offsets = [110, 0], sizes = [16, 32], strides = [1, 1]} : vector<180x32xf32> to vector<16x32xf32>
    %306 = vector.extract_strided_slice %6 {offsets = [5, 0], sizes = [1, 32], strides = [1, 1]} : vector<9x32xf32> to vector<1x32xf32>
    %307 = vector.broadcast %306 : vector<1x32xf32> to vector<16x32xf32>
    %308 = arith.mulf %305, %307 : vector<16x32xf32>
    %309 = arith.addf %304, %308 : vector<16x32xf32>
    %310 = vector.extract_strided_slice %5 {offsets = [126, 0], sizes = [16, 32], strides = [1, 1]} : vector<180x32xf32> to vector<16x32xf32>
    %311 = vector.extract_strided_slice %6 {offsets = [6, 0], sizes = [1, 32], strides = [1, 1]} : vector<9x32xf32> to vector<1x32xf32>
    %312 = vector.broadcast %311 : vector<1x32xf32> to vector<16x32xf32>
    %313 = arith.mulf %310, %312 : vector<16x32xf32>
    %314 = arith.addf %309, %313 : vector<16x32xf32>
    %315 = vector.extract_strided_slice %5 {offsets = [127, 0], sizes = [16, 32], strides = [1, 1]} : vector<180x32xf32> to vector<16x32xf32>
    %316 = vector.extract_strided_slice %6 {offsets = [7, 0], sizes = [1, 32], strides = [1, 1]} : vector<9x32xf32> to vector<1x32xf32>
    %317 = vector.broadcast %316 : vector<1x32xf32> to vector<16x32xf32>
    %318 = arith.mulf %315, %317 : vector<16x32xf32>
    %319 = arith.addf %314, %318 : vector<16x32xf32>
    %320 = vector.extract_strided_slice %5 {offsets = [128, 0], sizes = [16, 32], strides = [1, 1]} : vector<180x32xf32> to vector<16x32xf32>
    %321 = vector.extract_strided_slice %6 {offsets = [8, 0], sizes = [1, 32], strides = [1, 1]} : vector<9x32xf32> to vector<1x32xf32>
    %322 = vector.broadcast %321 : vector<1x32xf32> to vector<16x32xf32>
    %323 = arith.mulf %320, %322 : vector<16x32xf32>
    %324 = arith.addf %319, %323 : vector<16x32xf32>
    %325 = vector.broadcast %7 : vector<1x32xf32> to vector<16x32xf32>
    %326 = arith.mulf %324, %325 : vector<16x32xf32>
    %327 = vector.broadcast %8 : vector<1x32xf32> to vector<16x32xf32>
    %328 = arith.addf %326, %327 : vector<16x32xf32>
    %cst_28 = arith.constant 0.000000e+00 : f32
    %329 = vector.broadcast %cst_28 : f32 to vector<16x32xf32>
    %330 = arith.maximumf %328, %329 : vector<16x32xf32>
    %331 = arith.truncf %330 : vector<16x32xf32> to vector<16x32xbf16>
    %c80 = arith.constant 80 : index
    %c0_29 = arith.constant 0 : index
    %332 = vector.load %arg11[%c80, %c0_29] : memref<128x32xbf16, #tpu.memory_space<vmem>>, vector<16x32xbf16>
    tpu.vector_store %arg11[%c80, %c0_29], %331 {strides = array<i32>} : memref<128x32xbf16, #tpu.memory_space<vmem>>, vector<16x32xbf16>,
    %cst_30 = arith.constant 0.000000e+00 : f32
    %333 = vector.broadcast %cst_30 : f32 to vector<16x32xf32>
    %334 = vector.extract_strided_slice %5 {offsets = [108, 0], sizes = [16, 32], strides = [1, 1]} : vector<180x32xf32> to vector<16x32xf32>
    %335 = vector.extract_strided_slice %6 {offsets = [0, 0], sizes = [1, 32], strides = [1, 1]} : vector<9x32xf32> to vector<1x32xf32>
    %336 = vector.broadcast %335 : vector<1x32xf32> to vector<16x32xf32>
    %337 = arith.mulf %334, %336 : vector<16x32xf32>
    %338 = arith.addf %333, %337 : vector<16x32xf32>
    %339 = vector.extract_strided_slice %5 {offsets = [109, 0], sizes = [16, 32], strides = [1, 1]} : vector<180x32xf32> to vector<16x32xf32>
    %340 = vector.extract_strided_slice %6 {offsets = [1, 0], sizes = [1, 32], strides = [1, 1]} : vector<9x32xf32> to vector<1x32xf32>
    %341 = vector.broadcast %340 : vector<1x32xf32> to vector<16x32xf32>
    %342 = arith.mulf %339, %341 : vector<16x32xf32>
    %343 = arith.addf %338, %342 : vector<16x32xf32>
    %344 = vector.extract_strided_slice %5 {offsets = [110, 0], sizes = [16, 32], strides = [1, 1]} : vector<180x32xf32> to vector<16x32xf32>
    %345 = vector.extract_strided_slice %6 {offsets = [2, 0], sizes = [1, 32], strides = [1, 1]} : vector<9x32xf32> to vector<1x32xf32>
    %346 = vector.broadcast %345 : vector<1x32xf32> to vector<16x32xf32>
    %347 = arith.mulf %344, %346 : vector<16x32xf32>
    %348 = arith.addf %343, %347 : vector<16x32xf32>
    %349 = vector.extract_strided_slice %5 {offsets = [126, 0], sizes = [16, 32], strides = [1, 1]} : vector<180x32xf32> to vector<16x32xf32>
    %350 = vector.extract_strided_slice %6 {offsets = [3, 0], sizes = [1, 32], strides = [1, 1]} : vector<9x32xf32> to vector<1x32xf32>
    %351 = vector.broadcast %350 : vector<1x32xf32> to vector<16x32xf32>
    %352 = arith.mulf %349, %351 : vector<16x32xf32>
    %353 = arith.addf %348, %352 : vector<16x32xf32>
    %354 = vector.extract_strided_slice %5 {offsets = [127, 0], sizes = [16, 32], strides = [1, 1]} : vector<180x32xf32> to vector<16x32xf32>
    %355 = vector.extract_strided_slice %6 {offsets = [4, 0], sizes = [1, 32], strides = [1, 1]} : vector<9x32xf32> to vector<1x32xf32>
    %356 = vector.broadcast %355 : vector<1x32xf32> to vector<16x32xf32>
    %357 = arith.mulf %354, %356 : vector<16x32xf32>
    %358 = arith.addf %353, %357 : vector<16x32xf32>
    %359 = vector.extract_strided_slice %5 {offsets = [128, 0], sizes = [16, 32], strides = [1, 1]} : vector<180x32xf32> to vector<16x32xf32>
    %360 = vector.extract_strided_slice %6 {offsets = [5, 0], sizes = [1, 32], strides = [1, 1]} : vector<9x32xf32> to vector<1x32xf32>
    %361 = vector.broadcast %360 : vector<1x32xf32> to vector<16x32xf32>
    %362 = arith.mulf %359, %361 : vector<16x32xf32>
    %363 = arith.addf %358, %362 : vector<16x32xf32>
    %364 = vector.extract_strided_slice %5 {offsets = [144, 0], sizes = [16, 32], strides = [1, 1]} : vector<180x32xf32> to vector<16x32xf32>
    %365 = vector.extract_strided_slice %6 {offsets = [6, 0], sizes = [1, 32], strides = [1, 1]} : vector<9x32xf32> to vector<1x32xf32>
    %366 = vector.broadcast %365 : vector<1x32xf32> to vector<16x32xf32>
    %367 = arith.mulf %364, %366 : vector<16x32xf32>
    %368 = arith.addf %363, %367 : vector<16x32xf32>
    %369 = vector.extract_strided_slice %5 {offsets = [145, 0], sizes = [16, 32], strides = [1, 1]} : vector<180x32xf32> to vector<16x32xf32>
    %370 = vector.extract_strided_slice %6 {offsets = [7, 0], sizes = [1, 32], strides = [1, 1]} : vector<9x32xf32> to vector<1x32xf32>
    %371 = vector.broadcast %370 : vector<1x32xf32> to vector<16x32xf32>
    %372 = arith.mulf %369, %371 : vector<16x32xf32>
    %373 = arith.addf %368, %372 : vector<16x32xf32>
    %374 = vector.extract_strided_slice %5 {offsets = [146, 0], sizes = [16, 32], strides = [1, 1]} : vector<180x32xf32> to vector<16x32xf32>
    %375 = vector.extract_strided_slice %6 {offsets = [8, 0], sizes = [1, 32], strides = [1, 1]} : vector<9x32xf32> to vector<1x32xf32>
    %376 = vector.broadcast %375 : vector<1x32xf32> to vector<16x32xf32>
    %377 = arith.mulf %374, %376 : vector<16x32xf32>
    %378 = arith.addf %373, %377 : vector<16x32xf32>
    %379 = vector.broadcast %7 : vector<1x32xf32> to vector<16x32xf32>
    %380 = arith.mulf %378, %379 : vector<16x32xf32>
    %381 = vector.broadcast %8 : vector<1x32xf32> to vector<16x32xf32>
    %382 = arith.addf %380, %381 : vector<16x32xf32>
    %cst_31 = arith.constant 0.000000e+00 : f32
    %383 = vector.broadcast %cst_31 : f32 to vector<16x32xf32>
    %384 = arith.maximumf %382, %383 : vector<16x32xf32>
    %385 = arith.truncf %384 : vector<16x32xf32> to vector<16x32xbf16>
    %c96 = arith.constant 96 : index
    %c0_32 = arith.constant 0 : index
    %386 = vector.load %arg11[%c96, %c0_32] : memref<128x32xbf16, #tpu.memory_space<vmem>>, vector<16x32xbf16>
    tpu.vector_store %arg11[%c96, %c0_32], %385 {strides = array<i32>} : memref<128x32xbf16, #tpu.memory_space<vmem>>, vector<16x32xbf16>,
    %cst_33 = arith.constant 0.000000e+00 : f32
    %387 = vector.broadcast %cst_33 : f32 to vector<16x32xf32>
    %388 = vector.extract_strided_slice %5 {offsets = [126, 0], sizes = [16, 32], strides = [1, 1]} : vector<180x32xf32> to vector<16x32xf32>
    %389 = vector.extract_strided_slice %6 {offsets = [0, 0], sizes = [1, 32], strides = [1, 1]} : vector<9x32xf32> to vector<1x32xf32>
    %390 = vector.broadcast %389 : vector<1x32xf32> to vector<16x32xf32>
    %391 = arith.mulf %388, %390 : vector<16x32xf32>
    %392 = arith.addf %387, %391 : vector<16x32xf32>
    %393 = vector.extract_strided_slice %5 {offsets = [127, 0], sizes = [16, 32], strides = [1, 1]} : vector<180x32xf32> to vector<16x32xf32>
    %394 = vector.extract_strided_slice %6 {offsets = [1, 0], sizes = [1, 32], strides = [1, 1]} : vector<9x32xf32> to vector<1x32xf32>
    %395 = vector.broadcast %394 : vector<1x32xf32> to vector<16x32xf32>
    %396 = arith.mulf %393, %395 : vector<16x32xf32>
    %397 = arith.addf %392, %396 : vector<16x32xf32>
    %398 = vector.extract_strided_slice %5 {offsets = [128, 0], sizes = [16, 32], strides = [1, 1]} : vector<180x32xf32> to vector<16x32xf32>
    %399 = vector.extract_strided_slice %6 {offsets = [2, 0], sizes = [1, 32], strides = [1, 1]} : vector<9x32xf32> to vector<1x32xf32>
    %400 = vector.broadcast %399 : vector<1x32xf32> to vector<16x32xf32>
    %401 = arith.mulf %398, %400 : vector<16x32xf32>
    %402 = arith.addf %397, %401 : vector<16x32xf32>
    %403 = vector.extract_strided_slice %5 {offsets = [144, 0], sizes = [16, 32], strides = [1, 1]} : vector<180x32xf32> to vector<16x32xf32>
    %404 = vector.extract_strided_slice %6 {offsets = [3, 0], sizes = [1, 32], strides = [1, 1]} : vector<9x32xf32> to vector<1x32xf32>
    %405 = vector.broadcast %404 : vector<1x32xf32> to vector<16x32xf32>
    %406 = arith.mulf %403, %405 : vector<16x32xf32>
    %407 = arith.addf %402, %406 : vector<16x32xf32>
    %408 = vector.extract_strided_slice %5 {offsets = [145, 0], sizes = [16, 32], strides = [1, 1]} : vector<180x32xf32> to vector<16x32xf32>
    %409 = vector.extract_strided_slice %6 {offsets = [4, 0], sizes = [1, 32], strides = [1, 1]} : vector<9x32xf32> to vector<1x32xf32>
    %410 = vector.broadcast %409 : vector<1x32xf32> to vector<16x32xf32>
    %411 = arith.mulf %408, %410 : vector<16x32xf32>
    %412 = arith.addf %407, %411 : vector<16x32xf32>
    %413 = vector.extract_strided_slice %5 {offsets = [146, 0], sizes = [16, 32], strides = [1, 1]} : vector<180x32xf32> to vector<16x32xf32>
    %414 = vector.extract_strided_slice %6 {offsets = [5, 0], sizes = [1, 32], strides = [1, 1]} : vector<9x32xf32> to vector<1x32xf32>
    %415 = vector.broadcast %414 : vector<1x32xf32> to vector<16x32xf32>
    %416 = arith.mulf %413, %415 : vector<16x32xf32>
    %417 = arith.addf %412, %416 : vector<16x32xf32>
    %418 = vector.extract_strided_slice %5 {offsets = [162, 0], sizes = [16, 32], strides = [1, 1]} : vector<180x32xf32> to vector<16x32xf32>
    %419 = vector.extract_strided_slice %6 {offsets = [6, 0], sizes = [1, 32], strides = [1, 1]} : vector<9x32xf32> to vector<1x32xf32>
    %420 = vector.broadcast %419 : vector<1x32xf32> to vector<16x32xf32>
    %421 = arith.mulf %418, %420 : vector<16x32xf32>
    %422 = arith.addf %417, %421 : vector<16x32xf32>
    %423 = vector.extract_strided_slice %5 {offsets = [163, 0], sizes = [16, 32], strides = [1, 1]} : vector<180x32xf32> to vector<16x32xf32>
    %424 = vector.extract_strided_slice %6 {offsets = [7, 0], sizes = [1, 32], strides = [1, 1]} : vector<9x32xf32> to vector<1x32xf32>
    %425 = vector.broadcast %424 : vector<1x32xf32> to vector<16x32xf32>
    %426 = arith.mulf %423, %425 : vector<16x32xf32>
    %427 = arith.addf %422, %426 : vector<16x32xf32>
    %428 = vector.extract_strided_slice %5 {offsets = [164, 0], sizes = [16, 32], strides = [1, 1]} : vector<180x32xf32> to vector<16x32xf32>
    %429 = vector.extract_strided_slice %6 {offsets = [8, 0], sizes = [1, 32], strides = [1, 1]} : vector<9x32xf32> to vector<1x32xf32>
    %430 = vector.broadcast %429 : vector<1x32xf32> to vector<16x32xf32>
    %431 = arith.mulf %428, %430 : vector<16x32xf32>
    %432 = arith.addf %427, %431 : vector<16x32xf32>
    %433 = vector.broadcast %7 : vector<1x32xf32> to vector<16x32xf32>
    %434 = arith.mulf %432, %433 : vector<16x32xf32>
    %435 = vector.broadcast %8 : vector<1x32xf32> to vector<16x32xf32>
    %436 = arith.addf %434, %435 : vector<16x32xf32>
    %cst_34 = arith.constant 0.000000e+00 : f32
    %437 = vector.broadcast %cst_34 : f32 to vector<16x32xf32>
    %438 = arith.maximumf %436, %437 : vector<16x32xf32>
    %439 = arith.truncf %438 : vector<16x32xf32> to vector<16x32xbf16>
    %c112 = arith.constant 112 : index
    %c0_35 = arith.constant 0 : index
    %440 = vector.load %arg11[%c112, %c0_35] : memref<128x32xbf16, #tpu.memory_space<vmem>>, vector<16x32xbf16>
    tpu.vector_store %arg11[%c112, %c0_35], %439 {strides = array<i32>} : memref<128x32xbf16, #tpu.memory_space<vmem>>, vector<16x32xbf16>,
    %c0_36 = arith.constant 0 : index
    %c0_37 = arith.constant 0 : index
    %441 = vector.load %arg11[%c0_36, %c0_37] : memref<128x32xbf16, #tpu.memory_space<vmem>>, vector<128x32xbf16>
    %c0_38 = arith.constant 0 : index
    %c0_39 = arith.constant 0 : index
    %442 = vector.load %arg6[%c0_38, %c0_39] : memref<32x8xbf16, #tpu.memory_space<vmem>>, vector<32x8xbf16>
    %cst_40 = arith.constant dense<0.000000e+00> : vector<128x8xf32>
    %443 = tpu.matmul %441, %442, %cst_40 {dimension_numbers = #tpu.dot_dimension_numbers<[1], [0], [0], [1], [0, 0, 1, 1], [], []>} : vector<128x32xbf16>, vector<32x8xbf16>, vector<128x8xf32> -> vector<128x8xf32>
    %c0_41 = arith.constant 0 : index
    %c0_42 = arith.constant 0 : index
    %444 = vector.load %arg7[%c0_41, %c0_42] : memref<1x8xf32, #tpu.memory_space<vmem>>, vector<1x8xf32>
    %445 = vector.broadcast %444 : vector<1x8xf32> to vector<128x8xf32>
    %446 = arith.mulf %443, %445 : vector<128x8xf32>
    %c0_43 = arith.constant 0 : index
    %c0_44 = arith.constant 0 : index
    %447 = vector.load %arg8[%c0_43, %c0_44] : memref<1x8xf32, #tpu.memory_space<vmem>>, vector<1x8xf32>
    %448 = vector.broadcast %447 : vector<1x8xf32> to vector<128x8xf32>
    %449 = arith.addf %446, %448 : vector<128x8xf32>
    %c0_45 = arith.constant 0 : index
    %c0_46 = arith.constant 0 : index
    %c0_47 = arith.constant 0 : index
    %450 = vector.load %arg9[%c0_45, %c0_46, %c0_47] : memref<1x128x8xbf16, #tpu.memory_space<vmem>>, vector<1x128x8xbf16>
    %451 = vector.shape_cast %450 : vector<1x128x8xbf16> to vector<128x8xbf16>
    %452 = arith.extf %451 : vector<128x8xbf16> to vector<128x8xf32>
    %453 = arith.addf %449, %452 : vector<128x8xf32>
    %c0_48 = arith.constant 0 : index
    %c0_49 = arith.constant 0 : index
    %c0_50 = arith.constant 0 : index
    %454 = vector.load %arg10[%c0_48, %c0_49, %c0_50] : memref<1x128x8xf32, #tpu.memory_space<vmem>>, vector<1x128x8xf32>
    %455 = vector.shape_cast %454 : vector<1x128x8xf32> to vector<128x8xf32>
    %456 = vector.shape_cast %453 : vector<128x8xf32> to vector<1x128x8xf32>
    tpu.vector_store %arg10[%c0_48, %c0_49, %c0_50], %456 {strides = array<i32>} : memref<1x128x8xf32, #tpu.memory_space<vmem>>, vector<1x128x8xf32>,
    return
  }
  func.func @transform_0(%arg0: i32) -> (i32, i32, i32) {
    %c0_i32 = arith.constant 0 : i32
    %c0_i32_0 = arith.constant 0 : i32
    %c0_i32_1 = arith.constant 0 : i32
    return %arg0, %c0_i32, %c0_i32_0 : i32, i32, i32
  }
  func.func @transform_1(%arg0: i32) -> (i32, i32) {
    %c0_i32 = arith.constant 0 : i32
    %c0_i32_0 = arith.constant 0 : i32
    %c0_i32_1 = arith.constant 0 : i32
    return %c0_i32, %c0_i32_0 : i32, i32
  }
  func.func @transform_2(%arg0: i32) -> (i32, i32) {
    %c0_i32 = arith.constant 0 : i32
    %c0_i32_0 = arith.constant 0 : i32
    %c0_i32_1 = arith.constant 0 : i32
    return %c0_i32, %c0_i32_0 : i32, i32
  }
  func.func @transform_3(%arg0: i32) -> (i32, i32) {
    %c0_i32 = arith.constant 0 : i32
    %c0_i32_0 = arith.constant 0 : i32
    %c0_i32_1 = arith.constant 0 : i32
    return %c0_i32, %c0_i32_0 : i32, i32
  }
  func.func @transform_4(%arg0: i32) -> (i32, i32) {
    %c0_i32 = arith.constant 0 : i32
    %c0_i32_0 = arith.constant 0 : i32
    %c0_i32_1 = arith.constant 0 : i32
    return %c0_i32, %c0_i32_0 : i32, i32
  }
  func.func @transform_5(%arg0: i32) -> (i32, i32) {
    %c0_i32 = arith.constant 0 : i32
    %c0_i32_0 = arith.constant 0 : i32
    %c0_i32_1 = arith.constant 0 : i32
    return %c0_i32, %c0_i32_0 : i32, i32
  }
  func.func @transform_6(%arg0: i32) -> (i32, i32) {
    %c0_i32 = arith.constant 0 : i32
    %c0_i32_0 = arith.constant 0 : i32
    %c0_i32_1 = arith.constant 0 : i32
    return %c0_i32, %c0_i32_0 : i32, i32
  }
  func.func @transform_7(%arg0: i32) -> (i32, i32) {
    %c0_i32 = arith.constant 0 : i32
    %c0_i32_0 = arith.constant 0 : i32
    %c0_i32_1 = arith.constant 0 : i32
    return %c0_i32, %c0_i32_0 : i32, i32
  }
  func.func @transform_8(%arg0: i32) -> (i32, i32, i32) {
    %c0_i32 = arith.constant 0 : i32
    %c0_i32_0 = arith.constant 0 : i32
    %c0_i32_1 = arith.constant 0 : i32
    return %arg0, %c0_i32, %c0_i32_0 : i32, i32, i32
  }
  func.func @transform_9(%arg0: i32) -> (i32, i32, i32) {
    %c0_i32 = arith.constant 0 : i32
    %c0_i32_0 = arith.constant 0 : i32
    %c0_i32_1 = arith.constant 0 : i32
    return %arg0, %c0_i32, %c0_i32_0 : i32, i32, i32
  }
}

</mosaic_0001>

<llo_original>
// kernel: tpu_custom_call.1
$region0: #{tpu_custom_call.1}
  #allocation0 [shape = 'u32[]', space=smem, size = 0x4, offset = 0x4, fixed_abs, tag = 'smem constant byte address 0x4 - core index']
  #allocation1 [shape = 'u32[72,128]{1,0:T(1,128)}', space=vmem, size = 0x9000, scoped, tag = 'internal scratch']
  #allocation2 [shape = 'bf16[128,32]{1,0:T(8,128)(2,1)}', space=vmem, size = 0x8000, scoped, tag = 'scratch operand']
  %s0 = inlined_call_operand.vmem [shape: bf16[4,180,9], index: 0, kind: input, shape index: {}]
  %s1 = inlined_call_operand.vmem [shape: bf16[9,32], index: 1, kind: input, shape index: {}]
  %s2 = inlined_call_operand.vmem [shape: f32[9,32], index: 2, kind: input, shape index: {}]
  %s3 = inlined_call_operand.vmem [shape: f32[1,32], index: 3, kind: input, shape index: {}]
  %s4 = inlined_call_operand.vmem [shape: f32[1,32], index: 4, kind: input, shape index: {}]
  %s5 = inlined_call_operand.vmem [shape: bf16[32,8], index: 5, kind: input, shape index: {}]
  %s6 = inlined_call_operand.vmem [shape: f32[1,8], index: 6, kind: input, shape index: {}]
  %s7 = inlined_call_operand.vmem [shape: f32[1,8], index: 7, kind: input, shape index: {}]
  %s8 = inlined_call_operand.vmem [shape: bf16[4,128,8], index: 8, kind: input, shape index: {}]
  %s9 = inlined_call_operand.vmem [shape: f32[4,128,8], index: 9, kind: output, shape index: {}]
  %s10 = sld [smem:[#allocation0]]
  $region69: #{tpu_custom_call.1} parent=0
    _
  %s12 = ssub.s32 1, %s10
  %s13 = scalar_select 0, %s12, %s10
  loop: start=0, step=1, limit=6
  $region2: #{tpu_custom_call.1} parent=0 // loop_pre_header
    _
  $region3: #{tpu_custom_call.1} parent=0 // loop_header
    %s15 = sphi 0, %s19
    %p16 = scmp.ge.s32.totalorder %s15, 6
    %s25 = sphi 0, %s27
    %s28 = sphi 0, %s25
    %s29 = sphi 0, %s28
    %s45 = sphi 0, %s29
    %s49 = sphi 0, %s49
    %s51 = sphi 0, %s49
    %s52 = sphi 0, %s51
    %s66 = sphi 0, %s52
    %s70 = sphi 0, %s70
    %s72 = sphi 0, %s70
    %s73 = sphi 0, %s72
    %s87 = sphi 0, %s73
    %s91 = sphi 0, %s91
    %s93 = sphi 0, %s91
    %s94 = sphi 0, %s93
    %s108 = sphi 0, %s94
    %s112 = sphi 0, %s112
    %s114 = sphi 0, %s112
    %s115 = sphi 0, %s114
    %s129 = sphi 0, %s115
    %s133 = sphi 0, %s133
    %s135 = sphi 0, %s133
    %s136 = sphi 0, %s135
    %s150 = sphi 0, %s136
    %s154 = sphi 0, %s154
    %s156 = sphi 0, %s154
    %s157 = sphi 0, %s156
    %s171 = sphi 0, %s157
    %s175 = sphi 0, %s175
    %s177 = sphi 0, %s175
    %s178 = sphi 0, %s177
    %s192 = sphi 0, %s178
    %s198 = sphi 0, %s200
    %s201 = sphi 0, %s198
    %s202 = sphi 0, %s201
    %s218 = sphi 0, %s202
    %s224 = sphi 0, %s226
    %s227 = sphi 0, %s224
    %s228 = sphi 0, %s227
    %s244 = sphi 0, %s228
  $region4: #{tpu_custom_call.1} parent=0 // loop_header_branch
    %18 = sbr.rel (%p16) target = $region8
  $region5: #{tpu_custom_call.1} parent=0 // loop_body
    %s20 = ssub.s32 %s15, 1
    %s21 = ssub.s32 %s15, 2
    %s22 = sadd.s32 %s15, 1
    %s23 = ssub.s32 %s15, %s22
    %p24 = scmp.eq.s32.totalorder %s23, 0
    %s26 = sadd.s32 %s25, 1
    %s27 = scalar_select %p24, %s25, %s26
    %p30 = pneg %p24
    %p31 = scmp.eq.s32.totalorder %s15, 3
    %p32 = por %p30, %p31
    %p33 = scmp.ne.s32.totalorder %s25, %s28
    %p34 = scmp.eq.s32.totalorder %s15, 0
    %p35 = por %p33, %p34
    %p36 = scmp.ne.s32.totalorder %s25, %s28
    %p37 = scmp.eq.s32.totalorder %s20, 3
    %p38 = por %p36, %p37
    %p39 = scmp.ne.s32.totalorder %s28, %s29
    %p40 = scmp.eq.s32.totalorder %s20, 0
    %p41 = por %p39, %p40
    %p42 = scmp.ne.s32.totalorder %s28, %s29
    %p43 = scmp.eq.s32.totalorder %s21, 3
    %p44 = por %p42, %p43
    %p46 = scmp.ne.s32.totalorder %s29, %s45
    %p47 = scmp.eq.s32.totalorder %s21, 0
    %p48 = por %p46, %p47
    %s50 = sadd.s32 %s49, 1
    %p53 = scmp.eq.s32.totalorder %s15, 3
    %p54 = scmp.ne.s32.totalorder %s49, %s51
    %p55 = scmp.eq.s32.totalorder %s15, 0
    %p56 = por %p54, %p55
    %p57 = scmp.ne.s32.totalorder %s49, %s51
    %p58 = scmp.eq.s32.totalorder %s20, 3
    %p59 = por %p57, %p58
    %p60 = scmp.ne.s32.totalorder %s51, %s52
    %p61 = scmp.eq.s32.totalorder %s20, 0
    %p62 = por %p60, %p61
    %p63 = scmp.ne.s32.totalorder %s51, %s52
    %p64 = scmp.eq.s32.totalorder %s21, 3
    %p65 = por %p63, %p64
    %p67 = scmp.ne.s32.totalorder %s52, %s66
    %p68 = scmp.eq.s32.totalorder %s21, 0
    %p69 = por %p67, %p68
    %s71 = sadd.s32 %s70, 1
    %p74 = scmp.eq.s32.totalorder %s15, 3
    %p75 = scmp.ne.s32.totalorder %s70, %s72
    %p76 = scmp.eq.s32.totalorder %s15, 0
    %p77 = por %p75, %p76
    %p78 = scmp.ne.s32.totalorder %s70, %s72
    %p79 = scmp.eq.s32.totalorder %s20, 3
    %p80 = por %p78, %p79
    %p81 = scmp.ne.s32.totalorder %s72, %s73
    %p82 = scmp.eq.s32.totalorder %s20, 0
    %p83 = por %p81, %p82
    %p84 = scmp.ne.s32.totalorder %s72, %s73
    %p85 = scmp.eq.s32.totalorder %s21, 3
    %p86 = por %p84, %p85
    %p88 = scmp.ne.s32.totalorder %s73, %s87
    %p89 = scmp.eq.s32.totalorder %s21, 0
    %p90 = por %p88, %p89
    %s92 = sadd.s32 %s91, 1
    %p95 = scmp.eq.s32.totalorder %s15, 3
    %p96 = scmp.ne.s32.totalorder %s91, %s93
    %p97 = scmp.eq.s32.totalorder %s15, 0
    %p98 = por %p96, %p97
    %p99 = scmp.ne.s32.totalorder %s91, %s93
    %p100 = scmp.eq.s32.totalorder %s20, 3
    %p101 = por %p99, %p100
    %p102 = scmp.ne.s32.totalorder %s93, %s94
    %p103 = scmp.eq.s32.totalorder %s20, 0
    %p104 = por %p102, %p103
    %p105 = scmp.ne.s32.totalorder %s93, %s94
    %p106 = scmp.eq.s32.totalorder %s21, 3
    %p107 = por %p105, %p106
    %p109 = scmp.ne.s32.totalorder %s94, %s108
    %p110 = scmp.eq.s32.totalorder %s21, 0
    %p111 = por %p109, %p110
    %s113 = sadd.s32 %s112, 1
    %p116 = scmp.eq.s32.totalorder %s15, 3
    %p117 = scmp.ne.s32.totalorder %s112, %s114
    %p118 = scmp.eq.s32.totalorder %s15, 0
    %p119 = por %p117, %p118
    %p120 = scmp.ne.s32.totalorder %s112, %s114
    %p121 = scmp.eq.s32.totalorder %s20, 3
    %p122 = por %p120, %p121
    %p123 = scmp.ne.s32.totalorder %s114, %s115
    %p124 = scmp.eq.s32.totalorder %s20, 0
    %p125 = por %p123, %p124
    %p126 = scmp.ne.s32.totalorder %s114, %s115
    %p127 = scmp.eq.s32.totalorder %s21, 3
    %p128 = por %p126, %p127
    %p130 = scmp.ne.s32.totalorder %s115, %s129
    %p131 = scmp.eq.s32.totalorder %s21, 0
    %p132 = por %p130, %p131
    %s134 = sadd.s32 %s133, 1
    %p137 = scmp.eq.s32.totalorder %s15, 3
    %p138 = scmp.ne.s32.totalorder %s133, %s135
    %p139 = scmp.eq.s32.totalorder %s15, 0
    %p140 = por %p138, %p139
    %p141 = scmp.ne.s32.totalorder %s133, %s135
    %p142 = scmp.eq.s32.totalorder %s20, 3
    %p143 = por %p141, %p142
    %p144 = scmp.ne.s32.totalorder %s135, %s136
    %p145 = scmp.eq.s32.totalorder %s20, 0
    %p146 = por %p144, %p145
    %p147 = scmp.ne.s32.totalorder %s135, %s136
    %p148 = scmp.eq.s32.totalorder %s21, 3
    %p149 = por %p147, %p148
    %p151 = scmp.ne.s32.totalorder %s136, %s150
    %p152 = scmp.eq.s32.totalorder %s21, 0
    %p153 = por %p151, %p152
    %s155 = sadd.s32 %s154, 1
    %p158 = scmp.eq.s32.totalorder %s15, 3
    %p159 = scmp.ne.s32.totalorder %s154, %s156
    %p160 = scmp.eq.s32.totalorder %s15, 0
    %p161 = por %p159, %p160
    %p162 = scmp.ne.s32.totalorder %s154, %s156
    %p163 = scmp.eq.s32.totalorder %s20, 3
    %p164 = por %p162, %p163
    %p165 = scmp.ne.s32.totalorder %s156, %s157
    %p166 = scmp.eq.s32.totalorder %s20, 0
    %p167 = por %p165, %p166
    %p168 = scmp.ne.s32.totalorder %s156, %s157
    %p169 = scmp.eq.s32.totalorder %s21, 3
    %p170 = por %p168, %p169
    %p172 = scmp.ne.s32.totalorder %s157, %s171
    %p173 = scmp.eq.s32.totalorder %s21, 0
    %p174 = por %p172, %p173
    %s176 = sadd.s32 %s175, 1
    %p179 = scmp.eq.s32.totalorder %s15, 3
    %p180 = scmp.ne.s32.totalorder %s175, %s177
    %p181 = scmp.eq.s32.totalorder %s15, 0
    %p182 = por %p180, %p181
    %p183 = scmp.ne.s32.totalorder %s175, %s177
    %p184 = scmp.eq.s32.totalorder %s20, 3
    %p185 = por %p183, %p184
    %p186 = scmp.ne.s32.totalorder %s177, %s178
    %p187 = scmp.eq.s32.totalorder %s20, 0
    %p188 = por %p186, %p187
    %p189 = scmp.ne.s32.totalorder %s177, %s178
    %p190 = scmp.eq.s32.totalorder %s21, 3
    %p191 = por %p189, %p190
    %p193 = scmp.ne.s32.totalorder %s178, %s192
    %p194 = scmp.eq.s32.totalorder %s21, 0
    %p195 = por %p193, %p194
    %s196 = ssub.s32 %s15, %s22
    %p197 = scmp.eq.s32.totalorder %s196, 0
    %s199 = sadd.s32 %s198, 1
    %s200 = scalar_select %p197, %s198, %s199
    %p203 = pneg %p197
    %p204 = scmp.eq.s32.totalorder %s15, 3
    %p205 = por %p203, %p204
    %p206 = scmp.ne.s32.totalorder %s198, %s201
    %p207 = scmp.eq.s32.totalorder %s15, 0
    %p208 = por %p206, %p207
    %p209 = scmp.ne.s32.totalorder %s198, %s201
    %p210 = scmp.eq.s32.totalorder %s20, 3
    %p211 = por %p209, %p210
    %p212 = scmp.ne.s32.totalorder %s201, %s202
    %p213 = scmp.eq.s32.totalorder %s20, 0
    %p214 = por %p212, %p213
    %p215 = scmp.ne.s32.totalorder %s201, %s202
    %p216 = scmp.eq.s32.totalorder %s21, 3
    %p217 = por %p215, %p216
    %p219 = scmp.ne.s32.totalorder %s202, %s218
    %p220 = scmp.eq.s32.totalorder %s21, 0
    %p221 = por %p219, %p220
    %s222 = ssub.s32 %s15, %s22
    %p223 = scmp.eq.s32.totalorder %s222, 0
    %s225 = sadd.s32 %s224, 1
    %s226 = scalar_select %p223, %s224, %s225
    %p229 = pneg %p223
    %p230 = scmp.eq.s32.totalorder %s15, 3
    %p231 = por %p229, %p230
    %p232 = scmp.ne.s32.totalorder %s224, %s227
    %p233 = scmp.eq.s32.totalorder %s15, 0
    %p234 = por %p232, %p233
    %p235 = scmp.ne.s32.totalorder %s224, %s227
    %p236 = scmp.eq.s32.totalorder %s20, 3
    %p237 = por %p235, %p236
    %p238 = scmp.ne.s32.totalorder %s227, %s228
    %p239 = scmp.eq.s32.totalorder %s20, 0
    %p240 = por %p238, %p239
    %p241 = scmp.ne.s32.totalorder %s227, %s228
    %p242 = scmp.eq.s32.totalorder %s21, 3
    %p243 = por %p241, %p242
    %p245 = scmp.ne.s32.totalorder %s228, %s244
    %p246 = scmp.eq.s32.totalorder %s21, 0
    %p247 = por %p245, %p246
    %p248 = scmp.le.s32.totalorder 1, %s15
    %p249 = scmp.lt.s32.totalorder %s15, 5
    %p250 = pnand %p248, %p249
    %p251 = pneg %p250
    // Predicated region
    $region9: #{tpu_custom_call.1} parent=5 // pred_check
      _
    $region10: #{tpu_custom_call.1} parent=5 // pred_check_branch
      %253 = sbr.rel (%p250) target = $region12
    $region11: #{tpu_custom_call.1} parent=5 // pred_region
      %s254 = ssub.s32 %s15, 1
      // Predicated region
      $region13: #{tpu_custom_call.1} parent=11 // pred_check
        %p255 = pneg %p62
      $region14: #{tpu_custom_call.1} parent=11 // pred_check_branch
        %257 = sbr.rel (%p255) target = $region16
      $region15: #{tpu_custom_call.1} parent=11 // pred_region
        _
      $region16: #{tpu_custom_call.1} parent=11 // pred_fallthru
        _
      // Predicated region
      $region17: #{tpu_custom_call.1} parent=11 // pred_check
        %p258 = pneg %p83
      $region18: #{tpu_custom_call.1} parent=11 // pred_check_branch
        %260 = sbr.rel (%p258) target = $region20
      $region19: #{tpu_custom_call.1} parent=11 // pred_region
        _
      $region20: #{tpu_custom_call.1} parent=11 // pred_fallthru
        _
      // Predicated region
      $region21: #{tpu_custom_call.1} parent=11 // pred_check
        %p261 = pneg %p104
      $region22: #{tpu_custom_call.1} parent=11 // pred_check_branch
        %263 = sbr.rel (%p261) target = $region24
      $region23: #{tpu_custom_call.1} parent=11 // pred_region
        _
      $region24: #{tpu_custom_call.1} parent=11 // pred_fallthru
        _
      // Predicated region
      $region25: #{tpu_custom_call.1} parent=11 // pred_check
        %p264 = pneg %p125
      $region26: #{tpu_custom_call.1} parent=11 // pred_check_branch
        %266 = sbr.rel (%p264) target = $region28
      $region27: #{tpu_custom_call.1} parent=11 // pred_region
        _
      $region28: #{tpu_custom_call.1} parent=11 // pred_fallthru
        _
      // Predicated region
      $region29: #{tpu_custom_call.1} parent=11 // pred_check
        %p267 = pneg %p146
      $region30: #{tpu_custom_call.1} parent=11 // pred_check_branch
        %269 = sbr.rel (%p267) target = $region32
      $region31: #{tpu_custom_call.1} parent=11 // pred_region
        _
      $region32: #{tpu_custom_call.1} parent=11 // pred_fallthru
        _
      // Predicated region
      $region33: #{tpu_custom_call.1} parent=11 // pred_check
        %p270 = pneg %p167
      $region34: #{tpu_custom_call.1} parent=11 // pred_check_branch
        %272 = sbr.rel (%p270) target = $region36
      $region35: #{tpu_custom_call.1} parent=11 // pred_region
        _
      $region36: #{tpu_custom_call.1} parent=11 // pred_fallthru
        _
      // Predicated region
      $region37: #{tpu_custom_call.1} parent=11 // pred_check
        %p273 = pneg %p188
      $region38: #{tpu_custom_call.1} parent=11 // pred_check_branch
        %275 = sbr.rel (%p273) target = $region40
      $region39: #{tpu_custom_call.1} parent=11 // pred_region
        _
      $region40: #{tpu_custom_call.1} parent=11 // pred_fallthru
        _
    $region12: #{tpu_custom_call.1} parent=5 // pred_fallthru
      _
    %p276 = scmp.lt.s32.totalorder %s15, 4
    // Predicated region
    $region41: #{tpu_custom_call.1} parent=5 // pred_check
      %p277 = pneg %p276
    $region42: #{tpu_custom_call.1} parent=5 // pred_check_branch
      %279 = sbr.rel (%p277) target = $region44
    $region43: #{tpu_custom_call.1} parent=5 // pred_region
      // Predicated region
      $region45: #{tpu_custom_call.1} parent=43 // pred_check
        %p280 = pneg %p35
      $region46: #{tpu_custom_call.1} parent=43 // pred_check_branch
        %282 = sbr.rel (%p280) target = $region48
      $region47: #{tpu_custom_call.1} parent=43 // pred_region
        %p283 = scmp.lt.s32.totalorder %s15, 3
        %s284 = scalar_select %p283, %s15, 3
        %s285 = smul.addr %s284, 23
        %s286 = smul.addr %s285, 4
        %s287 = scalar_lea.vmem %s0, %s286
      $region48: #{tpu_custom_call.1} parent=43 // pred_fallthru
        _
      // Predicated region
      $region49: #{tpu_custom_call.1} parent=43 // pred_check
        %p288 = pneg %p208
      $region50: #{tpu_custom_call.1} parent=43 // pred_check_branch
        %290 = sbr.rel (%p288) target = $region52
      $region51: #{tpu_custom_call.1} parent=43 // pred_region
        %p291 = scmp.lt.s32.totalorder %s15, 3
        %s292 = scalar_select %p291, %s15, 3
        %s293 = smul.addr %s292, 16
        %s294 = smul.addr %s293, 4
        %s295 = scalar_lea.vmem %s8, %s294
      $region52: #{tpu_custom_call.1} parent=43 // pred_fallthru
        _
    $region44: #{tpu_custom_call.1} parent=5 // pred_fallthru
      _
    %p296 = scmp.le.s32.totalorder 1, %s15
    %p297 = scmp.lt.s32.totalorder %s15, 5
    %p298 = pnand %p296, %p297
    %p299 = pneg %p298
    // Predicated region
    $region53: #{tpu_custom_call.1} parent=5 // pred_check
      _
    $region54: #{tpu_custom_call.1} parent=5 // pred_check_branch
      %301 = sbr.rel (%p298) target = $region56
    $region55: #{tpu_custom_call.1} parent=5 // pred_region
      %s302 = ssub.s32 %s15, 1
      %p303 = scmp.lt.s32.totalorder %s20, 3
      %s304 = scalar_select %p303, %s20, 3
      %s305 = smul.addr %s304, 23
      %s306 = smul.addr %s305, 4
      %s307 = scalar_lea.vmem %s0, %s306
      %p308 = pneg %p41
      %p309 = pneg %p38
      %p310 = pneg %p62
      %p311 = pneg %p59
      %p312 = pneg %p83
      %p313 = pneg %p80
      %p314 = pneg %p104
      %p315 = pneg %p101
      %p316 = pneg %p125
      %p317 = pneg %p122
      %p318 = pneg %p146
      %p319 = pneg %p143
      %p320 = pneg %p167
      %p321 = pneg %p164
      %p322 = pneg %p188
      %p323 = pneg %p185
      %p324 = scmp.lt.s32.totalorder %s20, 3
      %s325 = scalar_select %p324, %s20, 3
      %s326 = smul.addr %s325, 16
      %s327 = smul.addr %s326, 4
      %s328 = scalar_lea.vmem %s8, %s327
      %p329 = pneg %p214
      %p330 = pneg %p211
      %p331 = pneg %p240
      %p332 = pneg %p237
      %p333 = scmp.lt.s32.totalorder %s20, 3
      %s334 = scalar_select %p333, %s20, 3
      %s335 = smul.addr %s334, 16
      %s336 = smul.addr %s335, 8
      %s337 = scalar_lea.vmem %s9, %s336
      %p338 = scmp.lt.s32.totalorder %s20, 3
      %s339 = scalar_select %p338, %s20, 3
      %s340 = smul.addr %s339, 23
      %s341 = smul.addr %s340, 4
      %s342 = scalar_lea.vmem %s0, %s341
      %p343 = scmp.lt.s32.totalorder %s20, 3
      %s344 = scalar_select %p343, %s20, 3
      %s345 = smul.addr %s344, 16
      %s346 = smul.addr %s345, 4
      %s347 = scalar_lea.vmem %s8, %s346
      %p348 = scmp.lt.s32.totalorder %s20, 3
      %s349 = scalar_select %p348, %s20, 3
      %s350 = smul.addr %s349, 16
      %s351 = smul.addr %s350, 8
      %s352 = scalar_lea.vmem %s9, %s351
      %v354 = vld [vmem:[%s342] sm:$0xf]
      %v355 = vld [vmem:[%s342 + $0x4] sm:$0xf]
      %v356 = vld [vmem:[%s342 + $0x8] sm:$0xf]
      %v357 = vld [vmem:[%s342 + $0xc] sm:$0xf]
      %v358 = vld [vmem:[%s342 + $0x10] sm:$0xf]
      %v359 = vld [vmem:[%s342 + $0x14] sm:$0xf]
      %v360 = vld [vmem:[%s342 + $0x18] sm:$0xf]
      %v361 = vld [vmem:[%s342 + $0x1c] sm:$0xf]
      %v362 = vld [vmem:[%s342 + $0x20] sm:$0xf]
      %v363 = vld [vmem:[%s342 + $0x24] sm:$0xf]
      %v364 = vld [vmem:[%s342 + $0x28] sm:$0xf]
      %v365 = vld [vmem:[%s342 + $0x2c] sm:$0xf]
      %v366 = vld [vmem:[%s342 + $0x30] sm:$0xf]
      %v367 = vld [vmem:[%s342 + $0x34] sm:$0xf]
      %v368 = vld [vmem:[%s342 + $0x38] sm:$0xf]
      %v369 = vld [vmem:[%s342 + $0x3c] sm:$0xf]
      %v370 = vld [vmem:[%s342 + $0x40] sm:$0xf]
      %v371 = vld [vmem:[%s342 + $0x44] sm:$0xf]
      %v372 = vld [vmem:[%s342 + $0x48] sm:$0xf]
      %v373 = vld [vmem:[%s342 + $0x4c] sm:$0xf]
      %v374 = vld [vmem:[%s342 + $0x50] sm:$0xf]
      %v375 = vld [vmem:[%s342 + $0x54] sm:$0xf]
      %v376 = vld [vmem:[%s342 + $0x58] sm:$0x3]
      %v377 = vld [vmem:[%s1] sm:$0xf]
      %v378 = vld [vmem:[%s1 + $0x4] sm:$0x1]
      %v402 = vunpack.c.l.b16 %v354
      %v403 = vunpack.c.l.b16 %v355
      %v404 = vunpack.c.l.b16 %v356
      %v405 = vunpack.c.l.b16 %v357
      %v406 = vunpack.c.l.b16 %v358
      %v407 = vunpack.c.l.b16 %v359
      %v408 = vunpack.c.l.b16 %v360
      %v409 = vunpack.c.l.b16 %v361
      %v410 = vunpack.c.l.b16 %v362
      %v411 = vunpack.c.l.b16 %v363
      %v412 = vunpack.c.l.b16 %v364
      %v413 = vunpack.c.l.b16 %v365
      %v414 = vunpack.c.l.b16 %v366
      %v415 = vunpack.c.l.b16 %v367
      %v416 = vunpack.c.l.b16 %v368
      %v417 = vunpack.c.l.b16 %v369
      %v418 = vunpack.c.l.b16 %v370
      %v419 = vunpack.c.l.b16 %v371
      %v420 = vunpack.c.l.b16 %v372
      %v421 = vunpack.c.l.b16 %v373
      %v422 = vunpack.c.l.b16 %v374
      %v423 = vunpack.c.l.b16 %v375
      %v424 = vunpack.c.l.b16 %v376
      %v425 = vpack.c.b16 %v403, %v402
      %v426 = vpack.c.b16 %v405, %v404
      %v427 = vpack.c.b16 %v407, %v406
      %v428 = vpack.c.b16 %v409, %v408
      %v429 = vpack.c.b16 %v411, %v410
      %v430 = vpack.c.b16 %v413, %v412
      %v431 = vpack.c.b16 %v415, %v414
      %v432 = vpack.c.b16 %v417, %v416
      %v433 = vpack.c.b16 %v419, %v418
      %v434 = vpack.c.b16 %v421, %v420
      %v435 = vpack.c.b16 %v423, %v422
      %v436 = vpack.c.b16 %v424, %v424
      %v439 = vunpack.c.l.b16 %v377
      %v440 = vunpack.c.l.b16 %v378
      %v441 = vpack.c.b16 %v440, %v439
      %vm442 = vcmask 72704
      %v444 = vsel %vm442, %v425, 0
      %v447 = vsel %vm442, %v426, 0
      %v450 = vsel %vm442, %v427, 0
      %v453 = vsel %vm442, %v428, 0
      %v456 = vsel %vm442, %v429, 0
      %v459 = vsel %vm442, %v430, 0
      %v462 = vsel %vm442, %v431, 0
      %v465 = vsel %vm442, %v432, 0
      %v468 = vsel %vm442, %v433, 0
      %v471 = vsel %vm442, %v434, 0
      %v474 = vsel %vm442, %v435, 0
      %v477 = vsel %vm442, %v436, 0
      %vm479 = vcmask 1043456
      %vm480 = vcmask 1044480
      %v481 = vsel %vm479, 4294967295, 65535
      %v482 = vsel %vm480, %v481, 0
      %v484 = vand.u32 %v441, %v482
      %486 = vmatpush.bf16.msra.mxu0 0
      %487 = vmatpush.bf16.msra.mxu0 0
      %488 = vmatpush.bf16.msra.mxu0 0
      %489 = vmatpush.bf16.msra.mxu0 0
      %490 = vmatpush.bf16.msra.mxu0 0
      %491 = vmatpush.bf16.msra.mxu0 0
      %492 = vmatpush.bf16.msra.mxu0 0
      %493 = vmatpush.bf16.msra.mxu0 %v484
      %494 = vmatmul.bf16.gmra.mxu0 %v444
      %v495 = vpop.f32.mrf.mxu0
      %v496 = vadd.f32 0.0, %v495
      %v497 = vpop.f32.mrf.mxu0
      %v498 = vadd.f32 0.0, %v497
      %499 = vmatmul.bf16.gmra.mxu0 %v447
      %v500 = vpop.f32.mrf.mxu0
      %v501 = vadd.f32 0.0, %v500
      %v502 = vpop.f32.mrf.mxu0
      %v503 = vadd.f32 0.0, %v502
      %504 = vmatmul.bf16.gmra.mxu0 %v450
      %v505 = vpop.f32.mrf.mxu0
      %v506 = vadd.f32 0.0, %v505
      %v507 = vpop.f32.mrf.mxu0
      %v508 = vadd.f32 0.0, %v507
      %509 = vmatmul.bf16.gmra.mxu0 %v453
      %v510 = vpop.f32.mrf.mxu0
      %v511 = vadd.f32 0.0, %v510
      %v512 = vpop.f32.mrf.mxu0
      %v513 = vadd.f32 0.0, %v512
      %514 = vmatmul.bf16.gmra.mxu0 %v456
      %v515 = vpop.f32.mrf.mxu0
      %v516 = vadd.f32 0.0, %v515
      %v517 = vpop.f32.mrf.mxu0
      %v518 = vadd.f32 0.0, %v517
      %519 = vmatmul.bf16.gmra.mxu0 %v459
      %v520 = vpop.f32.mrf.mxu0
      %v521 = vadd.f32 0.0, %v520
      %v522 = vpop.f32.mrf.mxu0
      %v523 = vadd.f32 0.0, %v522
      %524 = vmatmul.bf16.gmra.mxu0 %v462
      %v525 = vpop.f32.mrf.mxu0
      %v526 = vadd.f32 0.0, %v525
      %v527 = vpop.f32.mrf.mxu0
      %v528 = vadd.f32 0.0, %v527
      %529 = vmatmul.bf16.gmra.mxu0 %v465
      %v530 = vpop.f32.mrf.mxu0
      %v531 = vadd.f32 0.0, %v530
      %v532 = vpop.f32.mrf.mxu0
      %v533 = vadd.f32 0.0, %v532
      %534 = vmatmul.bf16.gmra.mxu0 %v468
      %v535 = vpop.f32.mrf.mxu0
      %v536 = vadd.f32 0.0, %v535
      %v537 = vpop.f32.mrf.mxu0
      %v538 = vadd.f32 0.0, %v537
      %539 = vmatmul.bf16.gmra.mxu0 %v471
      %v540 = vpop.f32.mrf.mxu0
      %v541 = vadd.f32 0.0, %v540
      %v542 = vpop.f32.mrf.mxu0
      %v543 = vadd.f32 0.0, %v542
      %544 = vmatmul.bf16.gmra.mxu0 %v474
      %v545 = vpop.f32.mrf.mxu0
      %v546 = vadd.f32 0.0, %v545
      %v547 = vpop.f32.mrf.mxu0
      %v548 = vadd.f32 0.0, %v547
      %549 = vmatmul.bf16.gmra.mxu0 %v477
      %v550 = vpop.f32.mrf.mxu0
      %v551 = vadd.f32 0.0, %v550
      %v552 = vpop.f32.mrf.mxu0
      %553 = vdwg.mxu0
      %v554 = vmax.f32 %v496, 0.0
      %v555 = vmax.f32 %v498, 0.0
      %v556 = vmax.f32 %v501, 0.0
      %v557 = vmax.f32 %v503, 0.0
      %v558 = vmax.f32 %v506, 0.0
      %v559 = vmax.f32 %v508, 0.0
      %v560 = vmax.f32 %v511, 0.0
      %v561 = vmax.f32 %v513, 0.0
      %v562 = vmax.f32 %v516, 0.0
      %v563 = vmax.f32 %v518, 0.0
      %v564 = vmax.f32 %v521, 0.0
      %v565 = vmax.f32 %v523, 0.0
      %v566 = vmax.f32 %v526, 0.0
      %v567 = vmax.f32 %v528, 0.0
      %v568 = vmax.f32 %v531, 0.0
      %v569 = vmax.f32 %v533, 0.0
      %v570 = vmax.f32 %v536, 0.0
      %v571 = vmax.f32 %v538, 0.0
      %v572 = vmax.f32 %v541, 0.0
      %v573 = vmax.f32 %v543, 0.0
      %v574 = vmax.f32 %v546, 0.0
      %v575 = vmax.f32 %v548, 0.0
      %v576 = vmax.f32 %v551, 0.0
      %v577 = vld [vmem:[%s2] sm:$0xff]
      %v578 = vld [vmem:[%s2 + $0x8] sm:$0x1]
      %v579 = vld [vmem:[%s3] sm:$0x1]
      %v580 = vld [vmem:[%s4] sm:$0x1]
      %v581 = vperm.slane %v577, 0
      %v582 = vmul.f32 %v554, %v581
      %v583 = vmul.f32 %v555, %v581
      %v584 = vadd.f32 %v582, 0.0
      %v585 = vadd.f32 %v583, 0.0
      %v586 = vperm.slane %v577, 1
      %v587 = vmul.f32 %v554, %v586
      %v588 = vmul.f32 %v555, %v586
      %v589 = vmul.f32 %v556, %v586
      %vm593 = vcmask 1046528
      %v594 = vrot.slane %v587, 1
      %v595 = vrot.slane %v588, 1
      %v596 = vsel %vm593, %v594, %v595
      %v597 = vrot.slane %v589, 1
      %v598 = vsel %vm593, %v595, %v597
      %v601 = vadd.f32 %v584, %v596
      %v602 = vadd.f32 %v585, %v598
      %v603 = vperm.slane %v577, 2
      %v604 = vmul.f32 %v554, %v603
      %v605 = vmul.f32 %v555, %v603
      %v606 = vmul.f32 %v556, %v603
      %vm610 = vcmask 1045504
      %v611 = vrot.slane %v604, 2
      %v612 = vrot.slane %v605, 2
      %v613 = vsel %vm610, %v611, %v612
      %v614 = vrot.slane %v606, 2
      %v615 = vsel %vm610, %v612, %v614
      %v618 = vadd.f32 %v601, %v613
      %v619 = vadd.f32 %v602, %v615
      %v620 = vperm.slane %v577, 3
      %v621 = vmul.f32 %v556, %v620
      %v622 = vmul.f32 %v557, %v620
      %v623 = vmul.f32 %v558, %v620
      %v627 = vrot.slane %v621, 2
      %v628 = vrot.slane %v622, 2
      %v629 = vsel %vm610, %v627, %v628
      %v630 = vrot.slane %v623, 2
      %v631 = vsel %vm610, %v628, %v630
      %v634 = vadd.f32 %v618, %v629
      %v635 = vadd.f32 %v619, %v631
      %v636 = vperm.slane %v577, 4
      %v637 = vmul.f32 %v556, %v636
      %v638 = vmul.f32 %v557, %v636
      %v639 = vmul.f32 %v558, %v636
      %v643 = vrot.slane %v637, 3
      %v644 = vrot.slane %v638, 3
      %v645 = vsel %vm480, %v643, %v644
      %v646 = vrot.slane %v639, 3
      %v647 = vsel %vm480, %v644, %v646
      %v650 = vadd.f32 %v634, %v645
      %v651 = vadd.f32 %v635, %v647
      %v652 = vperm.slane %v577, 5
      %v653 = vmul.f32 %v556, %v652
      %v654 = vmul.f32 %v557, %v652
      %v655 = vmul.f32 %v558, %v652
      %v659 = vrot.slane %v653, 4
      %v660 = vrot.slane %v654, 4
      %v661 = vsel %vm479, %v659, %v660
      %v662 = vrot.slane %v655, 4
      %v663 = vsel %vm479, %v660, %v662
      %v666 = vadd.f32 %v650, %v661
      %v667 = vadd.f32 %v651, %v663
      %v668 = vperm.slane %v577, 6
      %v669 = vmul.f32 %v558, %v668
      %v670 = vmul.f32 %v559, %v668
      %v671 = vmul.f32 %v560, %v668
      %v675 = vrot.slane %v669, 4
      %v676 = vrot.slane %v670, 4
      %v677 = vsel %vm479, %v675, %v676
      %v678 = vrot.slane %v671, 4
      %v679 = vsel %vm479, %v676, %v678
      %v682 = vadd.f32 %v666, %v677
      %v683 = vadd.f32 %v667, %v679
      %v684 = vperm.slane %v577, 7
      %v685 = vmul.f32 %v558, %v684
      %v686 = vmul.f32 %v559, %v684
      %v687 = vmul.f32 %v560, %v684
      %vm691 = vcmask 1042432
      %v692 = vrot.slane %v685, 5
      %v693 = vrot.slane %v686, 5
      %v694 = vsel %vm691, %v692, %v693
      %v695 = vrot.slane %v687, 5
      %v696 = vsel %vm691, %v693, %v695
      %v699 = vadd.f32 %v682, %v694
      %v700 = vadd.f32 %v683, %v696
      %v701 = vperm.slane %v578, 0
      %v702 = vmul.f32 %v558, %v701
      %v703 = vmul.f32 %v559, %v701
      %v704 = vmul.f32 %v560, %v701
      %vm708 = vcmask 1041408
      %v709 = vrot.slane %v702, 6
      %v710 = vrot.slane %v703, 6
      %v711 = vsel %vm708, %v709, %v710
      %v712 = vrot.slane %v704, 6
      %v713 = vsel %vm708, %v710, %v712
      %v716 = vadd.f32 %v699, %v711
      %v717 = vadd.f32 %v700, %v713
      %v719 = vperm.slane %v579, 0
      %v721 = vmul.f32 %v716, %v719
      %v722 = vmul.f32 %v717, %v719
      %v724 = vperm.slane %v580, 0
      %v726 = vadd.f32 %v721, %v724
      %v727 = vadd.f32 %v722, %v724
      %v728 = vmax.f32 %v726, 0.0
      %v729 = vmax.f32 %v727, 0.0
      %v730 = vpack.c.bf16 %v728, %v728
      %v731 = vpack.c.bf16 %v729, %v729
      %vm732 = vcmask 257024
      %733 = vst.msk [vmem:[#allocation2] sm:$0xf] %vm732, %v730
      %734 = vst.msk [vmem:[#allocation2 + $0x4] sm:$0xf] %vm732, %v731
      %v735 = vmul.f32 %v556, %v581
      %v736 = vmul.f32 %v557, %v581
      %v737 = vmul.f32 %v558, %v581
      %v738 = vadd.f32 %v735, 0.0
      %v739 = vadd.f32 %v736, 0.0
      %v740 = vadd.f32 %v737, 0.0
      %v741 = vmul.f32 %v557, %v586
      %v742 = vmul.f32 %v558, %v586
      %v745 = vrot.slane %v741, 1
      %v746 = vsel %vm593, %v597, %v745
      %v747 = vrot.slane %v742, 1
      %v748 = vsel %vm593, %v745, %v747
      %v752 = vadd.f32 %v738, %v746
      %v753 = vadd.f32 %v739, %v748
      %v754 = vadd.f32 %v740, %v747
      %v755 = vmul.f32 %v557, %v603
      %v756 = vmul.f32 %v558, %v603
      %v759 = vrot.slane %v755, 2
      %v760 = vsel %vm610, %v614, %v759
      %v761 = vrot.slane %v756, 2
      %v762 = vsel %vm610, %v759, %v761
      %v766 = vadd.f32 %v752, %v760
      %v767 = vadd.f32 %v753, %v762
      %v768 = vadd.f32 %v754, %v761
      %v769 = vmul.f32 %v559, %v620
      %v770 = vmul.f32 %v560, %v620
      %v773 = vrot.slane %v769, 2
      %v774 = vsel %vm610, %v630, %v773
      %v775 = vrot.slane %v770, 2
      %v776 = vsel %vm610, %v773, %v775
      %v780 = vadd.f32 %v766, %v774
      %v781 = vadd.f32 %v767, %v776
      %v782 = vadd.f32 %v768, %v775
      %v783 = vmul.f32 %v559, %v636
      %v784 = vmul.f32 %v560, %v636
      %v787 = vrot.slane %v783, 3
      %v788 = vsel %vm480, %v646, %v787
      %v789 = vrot.slane %v784, 3
      %v790 = vsel %vm480, %v787, %v789
      %v794 = vadd.f32 %v780, %v788
      %v795 = vadd.f32 %v781, %v790
      %v796 = vadd.f32 %v782, %v789
      %v797 = vmul.f32 %v559, %v652
      %v798 = vmul.f32 %v560, %v652
      %v801 = vrot.slane %v797, 4
      %v802 = vsel %vm479, %v662, %v801
      %v803 = vrot.slane %v798, 4
      %v804 = vsel %vm479, %v801, %v803
      %v808 = vadd.f32 %v794, %v802
      %v809 = vadd.f32 %v795, %v804
      %v810 = vadd.f32 %v796, %v803
      %v811 = vmul.f32 %v561, %v668
      %v812 = vmul.f32 %v562, %v668
      %v815 = vrot.slane %v811, 4
      %v816 = vsel %vm479, %v678, %v815
      %v817 = vrot.slane %v812, 4
      %v818 = vsel %vm479, %v815, %v817
      %v822 = vadd.f32 %v808, %v816
      %v823 = vadd.f32 %v809, %v818
      %v824 = vadd.f32 %v810, %v817
      %v825 = vmul.f32 %v561, %v684
      %v826 = vmul.f32 %v562, %v684
      %v829 = vrot.slane %v825, 5
      %v830 = vsel %vm691, %v695, %v829
      %v831 = vrot.slane %v826, 5
      %v832 = vsel %vm691, %v829, %v831
      %v836 = vadd.f32 %v822, %v830
      %v837 = vadd.f32 %v823, %v832
      %v838 = vadd.f32 %v824, %v831
      %v839 = vmul.f32 %v561, %v701
      %v840 = vmul.f32 %v562, %v701
      %v843 = vrot.slane %v839, 6
      %v844 = vrot.slane %v840, 6
      %v845 = vsel %vm708, %v843, %v844
      %v849 = vadd.f32 %v836, %v843
      %v850 = vadd.f32 %v837, %v845
      %v851 = vadd.f32 %v838, %v844
      %v852 = vmul.f32 %v849, %v719
      %v853 = vmul.f32 %v850, %v719
      %v854 = vmul.f32 %v851, %v719
      %v855 = vadd.f32 %v852, %v724
      %v856 = vadd.f32 %v853, %v724
      %v857 = vadd.f32 %v854, %v724
      %v858 = vmax.f32 %v855, 0.0
      %v859 = vmax.f32 %v856, 0.0
      %v860 = vmax.f32 %v857, 0.0
      %v861 = vpack.c.bf16 %v858, %v858
      %v862 = vpack.c.bf16 %v859, %v859
      %v863 = vpack.c.bf16 %v860, %v860
      %vm867 = vcmask 1042432
      %vm868 = vcmask 1046532
      %vm869 = vmor %vm867, %vm868
      %v870 = vrot.slane %v861, 5
      %v871 = vrot.slane %v870, 4
      %v872 = vrot.slane %v862, 5
      %v873 = vsel %vm869, %v871, %v872
      %v874 = vrot.slane %v872, 4
      %v875 = vrot.slane %v863, 5
      %v876 = vsel %vm869, %v874, %v875
      %879 = vst.msk [vmem:[#allocation2 + $0x8] sm:$0xf] %vm732, %v873
      %880 = vst.msk [vmem:[#allocation2 + $0xc] sm:$0xf] %vm732, %v876
      %v881 = vmul.f32 %v559, %v581
      %v882 = vmul.f32 %v560, %v581
      %v883 = vadd.f32 %v881, 0.0
      %v884 = vadd.f32 %v882, 0.0
      %v885 = vmul.f32 %v559, %v586
      %v886 = vmul.f32 %v560, %v586
      %v889 = vrot.slane %v885, 1
      %v890 = vsel %vm593, %v747, %v889
      %v891 = vrot.slane %v886, 1
      %v892 = vsel %vm593, %v889, %v891
      %v896 = vadd.f32 %v740, %v890
      %v897 = vadd.f32 %v883, %v892
      %v898 = vadd.f32 %v884, %v891
      %v899 = vmul.f32 %v559, %v603
      %v900 = vmul.f32 %v560, %v603
      %v903 = vrot.slane %v899, 2
      %v904 = vsel %vm610, %v761, %v903
      %v905 = vrot.slane %v900, 2
      %v906 = vsel %vm610, %v903, %v905
      %v910 = vadd.f32 %v896, %v904
      %v911 = vadd.f32 %v897, %v906
      %v912 = vadd.f32 %v898, %v905
      %v913 = vmul.f32 %v561, %v620
      %v914 = vmul.f32 %v562, %v620
      %v917 = vrot.slane %v913, 2
      %v918 = vsel %vm610, %v775, %v917
      %v919 = vrot.slane %v914, 2
      %v920 = vsel %vm610, %v917, %v919
      %v924 = vadd.f32 %v910, %v918
      %v925 = vadd.f32 %v911, %v920
      %v926 = vadd.f32 %v912, %v919
      %v927 = vmul.f32 %v561, %v636
      %v928 = vmul.f32 %v562, %v636
      %v931 = vrot.slane %v927, 3
      %v932 = vsel %vm480, %v789, %v931
      %v933 = vrot.slane %v928, 3
      %v934 = vsel %vm480, %v931, %v933
      %v938 = vadd.f32 %v924, %v932
      %v939 = vadd.f32 %v925, %v934
      %v940 = vadd.f32 %v926, %v933
      %v941 = vmul.f32 %v561, %v652
      %v942 = vmul.f32 %v562, %v652
      %v945 = vrot.slane %v941, 4
      %v946 = vrot.slane %v942, 4
      %v947 = vsel %vm479, %v945, %v946
      %v951 = vadd.f32 %v938, %v945
      %v952 = vadd.f32 %v939, %v947
      %v953 = vadd.f32 %v940, %v946
      %v954 = vmul.f32 %v563, %v668
      %v955 = vmul.f32 %v564, %v668
      %v958 = vrot.slane %v954, 4
      %v959 = vrot.slane %v955, 4
      %v960 = vsel %vm479, %v958, %v959
      %v964 = vadd.f32 %v951, %v958
      %v965 = vadd.f32 %v952, %v960
      %v966 = vadd.f32 %v953, %v959
      %v967 = vmul.f32 %v563, %v684
      %v968 = vmul.f32 %v564, %v684
      %v969 = vmul.f32 %v565, %v684
      %v973 = vrot.slane %v967, 5
      %v974 = vrot.slane %v968, 5
      %v975 = vsel %vm691, %v973, %v974
      %v976 = vrot.slane %v969, 5
      %v977 = vsel %vm691, %v974, %v976
      %v981 = vadd.f32 %v964, %v973
      %v982 = vadd.f32 %v965, %v975
      %v983 = vadd.f32 %v966, %v977
      %v984 = vmul.f32 %v563, %v701
      %v985 = vmul.f32 %v564, %v701
      %v986 = vmul.f32 %v565, %v701
      %v990 = vrot.slane %v984, 6
      %v991 = vrot.slane %v985, 6
      %v992 = vsel %vm708, %v990, %v991
      %v993 = vrot.slane %v986, 6
      %v994 = vsel %vm708, %v991, %v993
      %v998 = vadd.f32 %v981, %v990
      %v999 = vadd.f32 %v982, %v992
      %v1000 = vadd.f32 %v983, %v994
      %v1001 = vmul.f32 %v998, %v719
      %v1002 = vmul.f32 %v999, %v719
      %v1003 = vmul.f32 %v1000, %v719
      %v1004 = vadd.f32 %v1001, %v724
      %v1005 = vadd.f32 %v1002, %v724
      %v1006 = vadd.f32 %v1003, %v724
      %v1007 = vmax.f32 %v1004, 0.0
      %v1008 = vmax.f32 %v1005, 0.0
      %v1009 = vmax.f32 %v1006, 0.0
      %v1010 = vpack.c.bf16 %v1007, %v1007
      %v1011 = vpack.c.bf16 %v1008, %v1008
      %v1012 = vpack.c.bf16 %v1009, %v1009
      %vm1016 = vcmask 1041408
      %vm1017 = vcmask 1045508
      %vm1018 = vmor %vm1016, %vm1017
      %v1019 = vrot.slane %v1010, 6
      %v1020 = vrot.slane %v1019, 4
      %v1021 = vrot.slane %v1011, 6
      %v1022 = vsel %vm1018, %v1020, %v1021
      %v1023 = vrot.slane %v1021, 4
      %v1024 = vrot.slane %v1012, 6
      %v1025 = vsel %vm1018, %v1023, %v1024
      %1028 = vst.msk [vmem:[#allocation2 + $0x10] sm:$0xf] %vm732, %v1022
      %1029 = vst.msk [vmem:[#allocation2 + $0x14] sm:$0xf] %vm732, %v1025
      %v1030 = vmul.f32 %v561, %v581
      %v1031 = vmul.f32 %v562, %v581
      %v1032 = vadd.f32 %v1030, 0.0
      %v1033 = vadd.f32 %v1031, 0.0
      %v1034 = vmul.f32 %v561, %v586
      %v1035 = vmul.f32 %v562, %v586
      %v1038 = vrot.slane %v1034, 1
      %v1039 = vsel %vm593, %v891, %v1038
      %v1040 = vrot.slane %v1035, 1
      %v1041 = vsel %vm593, %v1038, %v1040
      %v1045 = vadd.f32 %v884, %v1039
      %v1046 = vadd.f32 %v1032, %v1041
      %v1047 = vadd.f32 %v1033, %v1040
      %v1048 = vmul.f32 %v561, %v603
      %v1049 = vmul.f32 %v562, %v603
      %v1052 = vrot.slane %v1048, 2
      %v1053 = vrot.slane %v1049, 2
      %v1054 = vsel %vm610, %v1052, %v1053
      %v1058 = vadd.f32 %v1045, %v1052
      %v1059 = vadd.f32 %v1046, %v1054
      %v1060 = vadd.f32 %v1047, %v1053
      %v1061 = vmul.f32 %v563, %v620
      %v1062 = vmul.f32 %v564, %v620
      %v1065 = vrot.slane %v1061, 2
      %v1066 = vrot.slane %v1062, 2
      %v1067 = vsel %vm610, %v1065, %v1066
      %v1071 = vadd.f32 %v1058, %v1065
      %v1072 = vadd.f32 %v1059, %v1067
      %v1073 = vadd.f32 %v1060, %v1066
      %v1074 = vmul.f32 %v563, %v636
      %v1075 = vmul.f32 %v564, %v636
      %v1076 = vmul.f32 %v565, %v636
      %v1080 = vrot.slane %v1074, 3
      %v1081 = vrot.slane %v1075, 3
      %v1082 = vsel %vm480, %v1080, %v1081
      %v1083 = vrot.slane %v1076, 3
      %v1084 = vsel %vm480, %v1081, %v1083
      %v1088 = vadd.f32 %v1071, %v1080
      %v1089 = vadd.f32 %v1072, %v1082
      %v1090 = vadd.f32 %v1073, %v1084
      %v1091 = vmul.f32 %v563, %v652
      %v1092 = vmul.f32 %v564, %v652
      %v1093 = vmul.f32 %v565, %v652
      %v1097 = vrot.slane %v1091, 4
      %v1098 = vrot.slane %v1092, 4
      %v1099 = vsel %vm479, %v1097, %v1098
      %v1100 = vrot.slane %v1093, 4
      %v1101 = vsel %vm479, %v1098, %v1100
      %v1105 = vadd.f32 %v1088, %v1097
      %v1106 = vadd.f32 %v1089, %v1099
      %v1107 = vadd.f32 %v1090, %v1101
      %v1108 = vmul.f32 %v565, %v668
      %v1109 = vmul.f32 %v566, %v668
      %v1110 = vmul.f32 %v567, %v668
      %v1114 = vrot.slane %v1108, 4
      %v1115 = vrot.slane %v1109, 4
      %v1116 = vsel %vm479, %v1114, %v1115
      %v1117 = vrot.slane %v1110, 4
      %v1118 = vsel %vm479, %v1115, %v1117
      %v1122 = vadd.f32 %v1105, %v1114
      %v1123 = vadd.f32 %v1106, %v1116
      %v1124 = vadd.f32 %v1107, %v1118
      %v1125 = vmul.f32 %v566, %v684
      %v1126 = vmul.f32 %v567, %v684
      %v1129 = vrot.slane %v1125, 5
      %v1130 = vsel %vm691, %v976, %v1129
      %v1131 = vrot.slane %v1126, 5
      %v1132 = vsel %vm691, %v1129, %v1131
      %v1136 = vadd.f32 %v1122, %v976
      %v1137 = vadd.f32 %v1123, %v1130
      %v1138 = vadd.f32 %v1124, %v1132
      %v1139 = vmul.f32 %v566, %v701
      %v1140 = vmul.f32 %v567, %v701
      %v1143 = vrot.slane %v1139, 6
      %v1144 = vsel %vm708, %v993, %v1143
      %v1145 = vrot.slane %v1140, 6
      %v1146 = vsel %vm708, %v1143, %v1145
      %v1150 = vadd.f32 %v1136, %v993
      %v1151 = vadd.f32 %v1137, %v1144
      %v1152 = vadd.f32 %v1138, %v1146
      %v1153 = vmul.f32 %v1150, %v719
      %v1154 = vmul.f32 %v1151, %v719
      %v1155 = vmul.f32 %v1152, %v719
      %v1156 = vadd.f32 %v1153, %v724
      %v1157 = vadd.f32 %v1154, %v724
      %v1158 = vadd.f32 %v1155, %v724
      %v1159 = vmax.f32 %v1156, 0.0
      %v1160 = vmax.f32 %v1157, 0.0
      %v1161 = vmax.f32 %v1158, 0.0
      %v1162 = vpack.c.bf16 %v1159, %v1159
      %v1163 = vpack.c.bf16 %v1160, %v1160
      %v1164 = vpack.c.bf16 %v1161, %v1161
      %vm1168 = vcmask 1040384
      %vm1169 = vcmask 1044484
      %vm1170 = vmor %vm1168, %vm1169
      %v1171 = vrot.slane %v1162, 7
      %v1172 = vrot.slane %v1171, 4
      %v1173 = vrot.slane %v1163, 7
      %v1174 = vsel %vm1170, %v1172, %v1173
      %v1175 = vrot.slane %v1173, 4
      %v1176 = vrot.slane %v1164, 7
      %v1177 = vsel %vm1170, %v1175, %v1176
      %1180 = vst.msk [vmem:[#allocation2 + $0x18] sm:$0xf] %vm732, %v1174
      %1181 = vst.msk [vmem:[#allocation2 + $0x1c] sm:$0xf] %vm732, %v1177
      %v1182 = vmul.f32 %v563, %v581
      %v1183 = vmul.f32 %v564, %v581
      %v1184 = vadd.f32 %v1182, 0.0
      %v1185 = vadd.f32 %v1183, 0.0
      %v1186 = vmul.f32 %v563, %v586
      %v1187 = vmul.f32 %v564, %v586
      %v1188 = vmul.f32 %v565, %v586
      %v1192 = vrot.slane %v1186, 1
      %v1193 = vrot.slane %v1187, 1
      %v1194 = vsel %vm593, %v1192, %v1193
      %v1195 = vrot.slane %v1188, 1
      %v1196 = vsel %vm593, %v1193, %v1195
      %v1199 = vadd.f32 %v1184, %v1194
      %v1200 = vadd.f32 %v1185, %v1196
      %v1201 = vmul.f32 %v563, %v603
      %v1202 = vmul.f32 %v564, %v603
      %v1203 = vmul.f32 %v565, %v603
      %v1207 = vrot.slane %v1201, 2
      %v1208 = vrot.slane %v1202, 2
      %v1209 = vsel %vm610, %v1207, %v1208
      %v1210 = vrot.slane %v1203, 2
      %v1211 = vsel %vm610, %v1208, %v1210
      %v1214 = vadd.f32 %v1199, %v1209
      %v1215 = vadd.f32 %v1200, %v1211
      %v1216 = vmul.f32 %v565, %v620
      %v1217 = vmul.f32 %v566, %v620
      %v1218 = vmul.f32 %v567, %v620
      %v1222 = vrot.slane %v1216, 2
      %v1223 = vrot.slane %v1217, 2
      %v1224 = vsel %vm610, %v1222, %v1223
      %v1225 = vrot.slane %v1218, 2
      %v1226 = vsel %vm610, %v1223, %v1225
      %v1229 = vadd.f32 %v1214, %v1224
      %v1230 = vadd.f32 %v1215, %v1226
      %v1231 = vmul.f32 %v566, %v636
      %v1232 = vmul.f32 %v567, %v636
      %v1235 = vrot.slane %v1231, 3
      %v1236 = vsel %vm480, %v1083, %v1235
      %v1237 = vrot.slane %v1232, 3
      %v1238 = vsel %vm480, %v1235, %v1237
      %v1241 = vadd.f32 %v1229, %v1236
      %v1242 = vadd.f32 %v1230, %v1238
      %v1243 = vmul.f32 %v566, %v652
      %v1244 = vmul.f32 %v567, %v652
      %v1247 = vrot.slane %v1243, 4
      %v1248 = vsel %vm479, %v1100, %v1247
      %v1249 = vrot.slane %v1244, 4
      %v1250 = vsel %vm479, %v1247, %v1249
      %v1253 = vadd.f32 %v1241, %v1248
      %v1254 = vadd.f32 %v1242, %v1250
      %v1255 = vmul.f32 %v568, %v668
      %v1256 = vmul.f32 %v569, %v668
      %v1259 = vrot.slane %v1255, 4
      %v1260 = vsel %vm479, %v1117, %v1259
      %v1261 = vrot.slane %v1256, 4
      %v1262 = vsel %vm479, %v1259, %v1261
      %v1265 = vadd.f32 %v1253, %v1260
      %v1266 = vadd.f32 %v1254, %v1262
      %v1267 = vmul.f32 %v568, %v684
      %v1268 = vmul.f32 %v569, %v684
      %v1271 = vrot.slane %v1267, 5
      %v1272 = vsel %vm691, %v1131, %v1271
      %v1273 = vrot.slane %v1268, 5
      %v1274 = vsel %vm691, %v1271, %v1273
      %v1277 = vadd.f32 %v1265, %v1272
      %v1278 = vadd.f32 %v1266, %v1274
      %v1279 = vmul.f32 %v568, %v701
      %v1280 = vmul.f32 %v569, %v701
      %v1283 = vrot.slane %v1279, 6
      %v1284 = vsel %vm708, %v1145, %v1283
      %v1285 = vrot.slane %v1280, 6
      %v1286 = vsel %vm708, %v1283, %v1285
      %v1289 = vadd.f32 %v1277, %v1284
      %v1290 = vadd.f32 %v1278, %v1286
      %v1291 = vmul.f32 %v1289, %v719
      %v1292 = vmul.f32 %v1290, %v719
      %v1293 = vadd.f32 %v1291, %v724
      %v1294 = vadd.f32 %v1292, %v724
      %v1295 = vmax.f32 %v1293, 0.0
      %v1296 = vmax.f32 %v1294, 0.0
      %v1297 = vpack.c.bf16 %v1295, %v1295
      %v1298 = vpack.c.bf16 %v1296, %v1296
      %1299 = vst.msk [vmem:[#allocation2 + $0x20] sm:$0xf] %vm732, %v1297
      %1300 = vst.msk [vmem:[#allocation2 + $0x24] sm:$0xf] %vm732, %v1298
      %v1301 = vmul.f32 %v565, %v581
      %v1302 = vmul.f32 %v566, %v581
      %v1303 = vmul.f32 %v567, %v581
      %v1304 = vadd.f32 %v1301, 0.0
      %v1305 = vadd.f32 %v1302, 0.0
      %v1306 = vadd.f32 %v1303, 0.0
      %v1307 = vmul.f32 %v566, %v586
      %v1308 = vmul.f32 %v567, %v586
      %v1311 = vrot.slane %v1307, 1
      %v1312 = vsel %vm593, %v1195, %v1311
      %v1313 = vrot.slane %v1308, 1
      %v1314 = vsel %vm593, %v1311, %v1313
      %v1318 = vadd.f32 %v1304, %v1312
      %v1319 = vadd.f32 %v1305, %v1314
      %v1320 = vadd.f32 %v1306, %v1313
      %v1321 = vmul.f32 %v566, %v603
      %v1322 = vmul.f32 %v567, %v603
      %v1325 = vrot.slane %v1321, 2
      %v1326 = vsel %vm610, %v1210, %v1325
      %v1327 = vrot.slane %v1322, 2
      %v1328 = vsel %vm610, %v1325, %v1327
      %v1332 = vadd.f32 %v1318, %v1326
      %v1333 = vadd.f32 %v1319, %v1328
      %v1334 = vadd.f32 %v1320, %v1327
      %v1335 = vmul.f32 %v568, %v620
      %v1336 = vmul.f32 %v569, %v620
      %v1339 = vrot.slane %v1335, 2
      %v1340 = vsel %vm610, %v1225, %v1339
      %v1341 = vrot.slane %v1336, 2
      %v1342 = vsel %vm610, %v1339, %v1341
      %v1346 = vadd.f32 %v1332, %v1340
      %v1347 = vadd.f32 %v1333, %v1342
      %v1348 = vadd.f32 %v1334, %v1341
      %v1349 = vmul.f32 %v568, %v636
      %v1350 = vmul.f32 %v569, %v636
      %v1353 = vrot.slane %v1349, 3
      %v1354 = vsel %vm480, %v1237, %v1353
      %v1355 = vrot.slane %v1350, 3
      %v1356 = vsel %vm480, %v1353, %v1355
      %v1360 = vadd.f32 %v1346, %v1354
      %v1361 = vadd.f32 %v1347, %v1356
      %v1362 = vadd.f32 %v1348, %v1355
      %v1363 = vmul.f32 %v568, %v652
      %v1364 = vmul.f32 %v569, %v652
      %v1367 = vrot.slane %v1363, 4
      %v1368 = vsel %vm479, %v1249, %v1367
      %v1369 = vrot.slane %v1364, 4
      %v1370 = vsel %vm479, %v1367, %v1369
      %v1374 = vadd.f32 %v1360, %v1368
      %v1375 = vadd.f32 %v1361, %v1370
      %v1376 = vadd.f32 %v1362, %v1369
      %v1377 = vmul.f32 %v570, %v668
      %v1378 = vmul.f32 %v571, %v668
      %v1381 = vrot.slane %v1377, 4
      %v1382 = vsel %vm479, %v1261, %v1381
      %v1383 = vrot.slane %v1378, 4
      %v1384 = vsel %vm479, %v1381, %v1383
      %v1388 = vadd.f32 %v1374, %v1382
      %v1389 = vadd.f32 %v1375, %v1384
      %v1390 = vadd.f32 %v1376, %v1383
      %v1391 = vmul.f32 %v570, %v684
      %v1392 = vmul.f32 %v571, %v684
      %v1395 = vrot.slane %v1391, 5
      %v1396 = vsel %vm691, %v1273, %v1395
      %v1397 = vrot.slane %v1392, 5
      %v1398 = vsel %vm691, %v1395, %v1397
      %v1402 = vadd.f32 %v1388, %v1396
      %v1403 = vadd.f32 %v1389, %v1398
      %v1404 = vadd.f32 %v1390, %v1397
      %v1405 = vmul.f32 %v570, %v701
      %v1406 = vmul.f32 %v571, %v701
      %v1409 = vrot.slane %v1405, 6
      %v1410 = vrot.slane %v1406, 6
      %v1411 = vsel %vm708, %v1409, %v1410
      %v1415 = vadd.f32 %v1402, %v1409
      %v1416 = vadd.f32 %v1403, %v1411
      %v1417 = vadd.f32 %v1404, %v1410
      %v1418 = vmul.f32 %v1415, %v719
      %v1419 = vmul.f32 %v1416, %v719
      %v1420 = vmul.f32 %v1417, %v719
      %v1421 = vadd.f32 %v1418, %v724
      %v1422 = vadd.f32 %v1419, %v724
      %v1423 = vadd.f32 %v1420, %v724
      %v1424 = vmax.f32 %v1421, 0.0
      %v1425 = vmax.f32 %v1422, 0.0
      %v1426 = vmax.f32 %v1423, 0.0
      %v1427 = vpack.c.bf16 %v1424, %v1424
      %v1428 = vpack.c.bf16 %v1425, %v1425
      %v1429 = vpack.c.bf16 %v1426, %v1426
      %v1433 = vrot.slane %v1427, 5
      %v1434 = vrot.slane %v1433, 4
      %v1435 = vrot.slane %v1428, 5
      %v1436 = vsel %vm869, %v1434, %v1435
      %v1437 = vrot.slane %v1435, 4
      %v1438 = vrot.slane %v1429, 5
      %v1439 = vsel %vm869, %v1437, %v1438
      %1442 = vst.msk [vmem:[#allocation2 + $0x28] sm:$0xf] %vm732, %v1436
      %1443 = vst.msk [vmem:[#allocation2 + $0x2c] sm:$0xf] %vm732, %v1439
      %v1444 = vmul.f32 %v568, %v581
      %v1445 = vmul.f32 %v569, %v581
      %v1446 = vadd.f32 %v1444, 0.0
      %v1447 = vadd.f32 %v1445, 0.0
      %v1448 = vmul.f32 %v568, %v586
      %v1449 = vmul.f32 %v569, %v586
      %v1452 = vrot.slane %v1448, 1
      %v1453 = vsel %vm593, %v1313, %v1452
      %v1454 = vrot.slane %v1449, 1
      %v1455 = vsel %vm593, %v1452, %v1454
      %v1459 = vadd.f32 %v1306, %v1453
      %v1460 = vadd.f32 %v1446, %v1455
      %v1461 = vadd.f32 %v1447, %v1454
      %v1462 = vmul.f32 %v568, %v603
      %v1463 = vmul.f32 %v569, %v603
      %v1466 = vrot.slane %v1462, 2
      %v1467 = vsel %vm610, %v1327, %v1466
      %v1468 = vrot.slane %v1463, 2
      %v1469 = vsel %vm610, %v1466, %v1468
      %v1473 = vadd.f32 %v1459, %v1467
      %v1474 = vadd.f32 %v1460, %v1469
      %v1475 = vadd.f32 %v1461, %v1468
      %v1476 = vmul.f32 %v570, %v620
      %v1477 = vmul.f32 %v571, %v620
      %v1480 = vrot.slane %v1476, 2
      %v1481 = vsel %vm610, %v1341, %v1480
      %v1482 = vrot.slane %v1477, 2
      %v1483 = vsel %vm610, %v1480, %v1482
      %v1487 = vadd.f32 %v1473, %v1481
      %v1488 = vadd.f32 %v1474, %v1483
      %v1489 = vadd.f32 %v1475, %v1482
      %v1490 = vmul.f32 %v570, %v636
      %v1491 = vmul.f32 %v571, %v636
      %v1494 = vrot.slane %v1490, 3
      %v1495 = vsel %vm480, %v1355, %v1494
      %v1496 = vrot.slane %v1491, 3
      %v1497 = vsel %vm480, %v1494, %v1496
      %v1501 = vadd.f32 %v1487, %v1495
      %v1502 = vadd.f32 %v1488, %v1497
      %v1503 = vadd.f32 %v1489, %v1496
      %v1504 = vmul.f32 %v570, %v652
      %v1505 = vmul.f32 %v571, %v652
      %v1508 = vrot.slane %v1504, 4
      %v1509 = vrot.slane %v1505, 4
      %v1510 = vsel %vm479, %v1508, %v1509
      %v1514 = vadd.f32 %v1501, %v1508
      %v1515 = vadd.f32 %v1502, %v1510
      %v1516 = vadd.f32 %v1503, %v1509
      %v1517 = vmul.f32 %v572, %v668
      %v1518 = vmul.f32 %v573, %v668
      %v1521 = vrot.slane %v1517, 4
      %v1522 = vrot.slane %v1518, 4
      %v1523 = vsel %vm479, %v1521, %v1522
      %v1527 = vadd.f32 %v1514, %v1521
      %v1528 = vadd.f32 %v1515, %v1523
      %v1529 = vadd.f32 %v1516, %v1522
      %v1530 = vmul.f32 %v572, %v684
      %v1531 = vmul.f32 %v573, %v684
      %v1532 = vmul.f32 %v574, %v684
      %v1536 = vrot.slane %v1530, 5
      %v1537 = vrot.slane %v1531, 5
      %v1538 = vsel %vm691, %v1536, %v1537
      %v1539 = vrot.slane %v1532, 5
      %v1540 = vsel %vm691, %v1537, %v1539
      %v1544 = vadd.f32 %v1527, %v1536
      %v1545 = vadd.f32 %v1528, %v1538
      %v1546 = vadd.f32 %v1529, %v1540
      %v1547 = vmul.f32 %v572, %v701
      %v1548 = vmul.f32 %v573, %v701
      %v1549 = vmul.f32 %v574, %v701
      %v1553 = vrot.slane %v1547, 6
      %v1554 = vrot.slane %v1548, 6
      %v1555 = vsel %vm708, %v1553, %v1554
      %v1556 = vrot.slane %v1549, 6
      %v1557 = vsel %vm708, %v1554, %v1556
      %v1561 = vadd.f32 %v1544, %v1553
      %v1562 = vadd.f32 %v1545, %v1555
      %v1563 = vadd.f32 %v1546, %v1557
      %v1564 = vmul.f32 %v1561, %v719
      %v1565 = vmul.f32 %v1562, %v719
      %v1566 = vmul.f32 %v1563, %v719
      %v1567 = vadd.f32 %v1564, %v724
      %v1568 = vadd.f32 %v1565, %v724
      %v1569 = vadd.f32 %v1566, %v724
      %v1570 = vmax.f32 %v1567, 0.0
      %v1571 = vmax.f32 %v1568, 0.0
      %v1572 = vmax.f32 %v1569, 0.0
      %v1573 = vpack.c.bf16 %v1570, %v1570
      %v1574 = vpack.c.bf16 %v1571, %v1571
      %v1575 = vpack.c.bf16 %v1572, %v1572
      %v1579 = vrot.slane %v1573, 6
      %v1580 = vrot.slane %v1579, 4
      %v1581 = vrot.slane %v1574, 6
      %v1582 = vsel %vm1018, %v1580, %v1581
      %v1583 = vrot.slane %v1581, 4
      %v1584 = vrot.slane %v1575, 6
      %v1585 = vsel %vm1018, %v1583, %v1584
      %1588 = vst.msk [vmem:[#allocation2 + $0x30] sm:$0xf] %vm732, %v1582
      %1589 = vst.msk [vmem:[#allocation2 + $0x34] sm:$0xf] %vm732, %v1585
      %v1590 = vmul.f32 %v570, %v581
      %v1591 = vmul.f32 %v571, %v581
      %v1592 = vadd.f32 %v1590, 0.0
      %v1593 = vadd.f32 %v1591, 0.0
      %v1594 = vmul.f32 %v570, %v586
      %v1595 = vmul.f32 %v571, %v586
      %v1598 = vrot.slane %v1594, 1
      %v1599 = vsel %vm593, %v1454, %v1598
      %v1600 = vrot.slane %v1595, 1
      %v1601 = vsel %vm593, %v1598, %v1600
      %v1605 = vadd.f32 %v1447, %v1599
      %v1606 = vadd.f32 %v1592, %v1601
      %v1607 = vadd.f32 %v1593, %v1600
      %v1608 = vmul.f32 %v570, %v603
      %v1609 = vmul.f32 %v571, %v603
      %v1612 = vrot.slane %v1608, 2
      %v1613 = vrot.slane %v1609, 2
      %v1614 = vsel %vm610, %v1612, %v1613
      %v1618 = vadd.f32 %v1605, %v1612
      %v1619 = vadd.f32 %v1606, %v1614
      %v1620 = vadd.f32 %v1607, %v1613
      %v1621 = vmul.f32 %v572, %v620
      %v1622 = vmul.f32 %v573, %v620
      %v1625 = vrot.slane %v1621, 2
      %v1626 = vrot.slane %v1622, 2
      %v1627 = vsel %vm610, %v1625, %v1626
      %v1631 = vadd.f32 %v1618, %v1625
      %v1632 = vadd.f32 %v1619, %v1627
      %v1633 = vadd.f32 %v1620, %v1626
      %v1634 = vmul.f32 %v572, %v636
      %v1635 = vmul.f32 %v573, %v636
      %v1636 = vmul.f32 %v574, %v636
      %v1640 = vrot.slane %v1634, 3
      %v1641 = vrot.slane %v1635, 3
      %v1642 = vsel %vm480, %v1640, %v1641
      %v1643 = vrot.slane %v1636, 3
      %v1644 = vsel %vm480, %v1641, %v1643
      %v1648 = vadd.f32 %v1631, %v1640
      %v1649 = vadd.f32 %v1632, %v1642
      %v1650 = vadd.f32 %v1633, %v1644
      %v1651 = vmul.f32 %v572, %v652
      %v1652 = vmul.f32 %v573, %v652
      %v1653 = vmul.f32 %v574, %v652
      %v1657 = vrot.slane %v1651, 4
      %v1658 = vrot.slane %v1652, 4
      %v1659 = vsel %vm479, %v1657, %v1658
      %v1660 = vrot.slane %v1653, 4
      %v1661 = vsel %vm479, %v1658, %v1660
      %v1665 = vadd.f32 %v1648, %v1657
      %v1666 = vadd.f32 %v1649, %v1659
      %v1667 = vadd.f32 %v1650, %v1661
      %v1668 = vmul.f32 %v574, %v668
      %v1669 = vmul.f32 %v575, %v668
      %v1670 = vmul.f32 %v576, %v668
      %v1674 = vrot.slane %v1668, 4
      %v1675 = vrot.slane %v1669, 4
      %v1676 = vsel %vm479, %v1674, %v1675
      %v1677 = vrot.slane %v1670, 4
      %v1678 = vsel %vm479, %v1675, %v1677
      %v1682 = vadd.f32 %v1665, %v1674
      %v1683 = vadd.f32 %v1666, %v1676
      %v1684 = vadd.f32 %v1667, %v1678
      %v1685 = vmul.f32 %v575, %v684
      %v1686 = vmul.f32 %v576, %v684
      %v1689 = vrot.slane %v1685, 5
      %v1690 = vsel %vm691, %v1539, %v1689
      %v1691 = vrot.slane %v1686, 5
      %v1692 = vsel %vm691, %v1689, %v1691
      %v1696 = vadd.f32 %v1682, %v1539
      %v1697 = vadd.f32 %v1683, %v1690
      %v1698 = vadd.f32 %v1684, %v1692
      %v1699 = vmul.f32 %v575, %v701
      %v1700 = vmul.f32 %v576, %v701
      %v1703 = vrot.slane %v1699, 6
      %v1704 = vsel %vm708, %v1556, %v1703
      %v1705 = vrot.slane %v1700, 6
      %v1706 = vsel %vm708, %v1703, %v1705
      %v1710 = vadd.f32 %v1696, %v1556
      %v1711 = vadd.f32 %v1697, %v1704
      %v1712 = vadd.f32 %v1698, %v1706
      %v1713 = vmul.f32 %v1710, %v719
      %v1714 = vmul.f32 %v1711, %v719
      %v1715 = vmul.f32 %v1712, %v719
      %v1716 = vadd.f32 %v1713, %v724
      %v1717 = vadd.f32 %v1714, %v724
      %v1718 = vadd.f32 %v1715, %v724
      %v1719 = vmax.f32 %v1716, 0.0
      %v1720 = vmax.f32 %v1717, 0.0
      %v1721 = vmax.f32 %v1718, 0.0
      %v1722 = vpack.c.bf16 %v1719, %v1719
      %v1723 = vpack.c.bf16 %v1720, %v1720
      %v1724 = vpack.c.bf16 %v1721, %v1721
      %v1728 = vrot.slane %v1722, 7
      %v1729 = vrot.slane %v1728, 4
      %v1730 = vrot.slane %v1723, 7
      %v1731 = vsel %vm1170, %v1729, %v1730
      %v1732 = vrot.slane %v1730, 4
      %v1733 = vrot.slane %v1724, 7
      %v1734 = vsel %vm1170, %v1732, %v1733
      %1737 = vst.msk [vmem:[#allocation2 + $0x38] sm:$0xf] %vm732, %v1731
      %1738 = vst.msk [vmem:[#allocation2 + $0x3c] sm:$0xf] %vm732, %v1734
      %v1739 = vld [vmem:[#allocation2] sm:$0xf]
      %v1740 = vld [vmem:[#allocation2 + $0x4] sm:$0xf]
      %v1741 = vld [vmem:[#allocation2 + $0x8] sm:$0xf]
      %v1742 = vld [vmem:[#allocation2 + $0xc] sm:$0xf]
      %v1743 = vld [vmem:[#allocation2 + $0x10] sm:$0xf]
      %v1744 = vld [vmem:[#allocation2 + $0x14] sm:$0xf]
      %v1745 = vld [vmem:[#allocation2 + $0x18] sm:$0xf]
      %v1746 = vld [vmem:[#allocation2 + $0x1c] sm:$0xf]
      %v1747 = vld [vmem:[#allocation2 + $0x20] sm:$0xf]
      %v1748 = vld [vmem:[#allocation2 + $0x24] sm:$0xf]
      %v1749 = vld [vmem:[#allocation2 + $0x28] sm:$0xf]
      %v1750 = vld [vmem:[#allocation2 + $0x2c] sm:$0xf]
      %v1751 = vld [vmem:[#allocation2 + $0x30] sm:$0xf]
      %v1752 = vld [vmem:[#allocation2 + $0x34] sm:$0xf]
      %v1753 = vld [vmem:[#allocation2 + $0x38] sm:$0xf]
      %v1754 = vld [vmem:[#allocation2 + $0x3c] sm:$0xf]
      %v1755 = vld [vmem:[%s5] sm:$0xf]
      %v1756 = vld [vmem:[%s5 + $0x4] sm:$0xf]
      %v1757 = vld [vmem:[%s5 + $0x8] sm:$0xf]
      %v1758 = vld [vmem:[%s5 + $0xc] sm:$0xf]
      %v1775 = vunpack.c.l.b16 %v1739
      %v1776 = vunpack.c.l.b16 %v1740
      %v1777 = vunpack.c.l.b16 %v1741
      %v1778 = vunpack.c.l.b16 %v1742
      %v1779 = vunpack.c.l.b16 %v1743
      %v1780 = vunpack.c.l.b16 %v1744
      %v1781 = vunpack.c.l.b16 %v1745
      %v1782 = vunpack.c.l.b16 %v1746
      %v1783 = vunpack.c.l.b16 %v1747
      %v1784 = vunpack.c.l.b16 %v1748
      %v1785 = vunpack.c.l.b16 %v1749
      %v1786 = vunpack.c.l.b16 %v1750
      %v1787 = vunpack.c.l.b16 %v1751
      %v1788 = vunpack.c.l.b16 %v1752
      %v1789 = vunpack.c.l.b16 %v1753
      %v1790 = vunpack.c.l.b16 %v1754
      %v1791 = vpack.c.b16 %v1776, %v1775
      %v1792 = vpack.c.b16 %v1778, %v1777
      %v1793 = vpack.c.b16 %v1780, %v1779
      %v1794 = vpack.c.b16 %v1782, %v1781
      %v1795 = vpack.c.b16 %v1784, %v1783
      %v1796 = vpack.c.b16 %v1786, %v1785
      %v1797 = vpack.c.b16 %v1788, %v1787
      %v1798 = vpack.c.b16 %v1790, %v1789
      %v1803 = vunpack.c.l.b16 %v1755
      %v1804 = vunpack.c.l.b16 %v1756
      %v1805 = vunpack.c.l.b16 %v1757
      %v1806 = vunpack.c.l.b16 %v1758
      %v1807 = vpack.c.b16 %v1804, %v1803
      %v1808 = vpack.c.b16 %v1806, %v1805
      %vm1811 = vcmask 261120
      %v1813 = vsel %vm1811, %v1791, 0
      %v1816 = vsel %vm1811, %v1792, 0
      %v1819 = vsel %vm1811, %v1793, 0
      %v1822 = vsel %vm1811, %v1794, 0
      %v1825 = vsel %vm1811, %v1795, 0
      %v1828 = vsel %vm1811, %v1796, 0
      %v1831 = vsel %vm1811, %v1797, 0
      %v1834 = vsel %vm1811, %v1798, 0
      %1836 = vmatpush.bf16.msra.mxu0 0
      %1837 = vmatpush.bf16.msra.mxu0 0
      %1838 = vmatpush.bf16.msra.mxu0 0
      %1839 = vmatpush.bf16.msra.mxu0 0
      %1840 = vmatpush.bf16.msra.mxu0 0
      %1841 = vmatpush.bf16.msra.mxu0 0
      %1842 = vmatpush.bf16.msra.mxu0 %v1808
      %1843 = vmatpush.bf16.msra.mxu0 %v1807
      %1844 = vmatmul.bf16.gmra.mxu0 %v1813
      %v1845 = vpop.f32.mrf.mxu0
      %v1846 = vadd.f32 0.0, %v1845
      %v1847 = vpop.f32.mrf.mxu0
      %v1848 = vadd.f32 0.0, %v1847
      %1849 = vmatmul.bf16.gmra.mxu0 %v1816
      %v1850 = vpop.f32.mrf.mxu0
      %v1851 = vadd.f32 0.0, %v1850
      %v1852 = vpop.f32.mrf.mxu0
      %v1853 = vadd.f32 0.0, %v1852
      %1854 = vmatmul.bf16.gmra.mxu0 %v1819
      %v1855 = vpop.f32.mrf.mxu0
      %v1856 = vadd.f32 0.0, %v1855
      %v1857 = vpop.f32.mrf.mxu0
      %v1858 = vadd.f32 0.0, %v1857
      %1859 = vmatmul.bf16.gmra.mxu0 %v1822
      %v1860 = vpop.f32.mrf.mxu0
      %v1861 = vadd.f32 0.0, %v1860
      %v1862 = vpop.f32.mrf.mxu0
      %v1863 = vadd.f32 0.0, %v1862
      %1864 = vmatmul.bf16.gmra.mxu0 %v1825
      %v1865 = vpop.f32.mrf.mxu0
      %v1866 = vadd.f32 0.0, %v1865
      %v1867 = vpop.f32.mrf.mxu0
      %v1868 = vadd.f32 0.0, %v1867
      %1869 = vmatmul.bf16.gmra.mxu0 %v1828
      %v1870 = vpop.f32.mrf.mxu0
      %v1871 = vadd.f32 0.0, %v1870
      %v1872 = vpop.f32.mrf.mxu0
      %v1873 = vadd.f32 0.0, %v1872
      %1874 = vmatmul.bf16.gmra.mxu0 %v1831
      %v1875 = vpop.f32.mrf.mxu0
      %v1876 = vadd.f32 0.0, %v1875
      %v1877 = vpop.f32.mrf.mxu0
      %v1878 = vadd.f32 0.0, %v1877
      %1879 = vmatmul.bf16.gmra.mxu0 %v1834
      %v1880 = vpop.f32.mrf.mxu0
      %v1881 = vadd.f32 0.0, %v1880
      %v1882 = vpop.f32.mrf.mxu0
      %v1883 = vadd.f32 0.0, %v1882
      %1884 = vdwg.mxu0
      %v1885 = vld [vmem:[%s6] sm:$0x1]
      %v1887 = vperm.slane %v1885, 0
      %v1889 = vmul.f32 %v1846, %v1887
      %v1890 = vmul.f32 %v1848, %v1887
      %v1891 = vmul.f32 %v1851, %v1887
      %v1892 = vmul.f32 %v1853, %v1887
      %v1893 = vmul.f32 %v1856, %v1887
      %v1894 = vmul.f32 %v1858, %v1887
      %v1895 = vmul.f32 %v1861, %v1887
      %v1896 = vmul.f32 %v1863, %v1887
      %v1897 = vmul.f32 %v1866, %v1887
      %v1898 = vmul.f32 %v1868, %v1887
      %v1899 = vmul.f32 %v1871, %v1887
      %v1900 = vmul.f32 %v1873, %v1887
      %v1901 = vmul.f32 %v1876, %v1887
      %v1902 = vmul.f32 %v1878, %v1887
      %v1903 = vmul.f32 %v1881, %v1887
      %v1904 = vmul.f32 %v1883, %v1887
      %v1905 = vld [vmem:[%s7] sm:$0x1]
      %v1907 = vperm.slane %v1905, 0
      %v1909 = vadd.f32 %v1889, %v1907
      %v1910 = vadd.f32 %v1890, %v1907
      %v1911 = vadd.f32 %v1891, %v1907
      %v1912 = vadd.f32 %v1892, %v1907
      %v1913 = vadd.f32 %v1893, %v1907
      %v1914 = vadd.f32 %v1894, %v1907
      %v1915 = vadd.f32 %v1895, %v1907
      %v1916 = vadd.f32 %v1896, %v1907
      %v1917 = vadd.f32 %v1897, %v1907
      %v1918 = vadd.f32 %v1898, %v1907
      %v1919 = vadd.f32 %v1899, %v1907
      %v1920 = vadd.f32 %v1900, %v1907
      %v1921 = vadd.f32 %v1901, %v1907
      %v1922 = vadd.f32 %v1902, %v1907
      %v1923 = vadd.f32 %v1903, %v1907
      %v1924 = vadd.f32 %v1904, %v1907
      %v1925 = vld [vmem:[%s347] sm:$0xf]
      %v1926 = vld [vmem:[%s347 + $0x4] sm:$0xf]
      %v1927 = vld [vmem:[%s347 + $0x8] sm:$0xf]
      %v1928 = vld [vmem:[%s347 + $0xc] sm:$0xf]
      %v1929 = vld [vmem:[%s347 + $0x10] sm:$0xf]
      %v1930 = vld [vmem:[%s347 + $0x14] sm:$0xf]
      %v1931 = vld [vmem:[%s347 + $0x18] sm:$0xf]
      %v1932 = vld [vmem:[%s347 + $0x1c] sm:$0xf]
      %v1933 = vld [vmem:[%s347 + $0x20] sm:$0xf]
      %v1934 = vld [vmem:[%s347 + $0x24] sm:$0xf]
      %v1935 = vld [vmem:[%s347 + $0x28] sm:$0xf]
      %v1936 = vld [vmem:[%s347 + $0x2c] sm:$0xf]
      %v1937 = vld [vmem:[%s347 + $0x30] sm:$0xf]
      %v1938 = vld [vmem:[%s347 + $0x34] sm:$0xf]
      %v1939 = vld [vmem:[%s347 + $0x38] sm:$0xf]
      %v1940 = vld [vmem:[%s347 + $0x3c] sm:$0xf]
      %v1941 = vunpack.c.l.bf16 %v1925
      %v1942 = vunpack.c.l.bf16 %v1926
      %v1943 = vunpack.c.l.bf16 %v1927
      %v1944 = vunpack.c.l.bf16 %v1928
      %v1945 = vunpack.c.l.bf16 %v1929
      %v1946 = vunpack.c.l.bf16 %v1930
      %v1947 = vunpack.c.l.bf16 %v1931
      %v1948 = vunpack.c.l.bf16 %v1932
      %v1949 = vunpack.c.l.bf16 %v1933
      %v1950 = vunpack.c.l.bf16 %v1934
      %v1951 = vunpack.c.l.bf16 %v1935
      %v1952 = vunpack.c.l.bf16 %v1936
      %v1953 = vunpack.c.l.bf16 %v1937
      %v1954 = vunpack.c.l.bf16 %v1938
      %v1955 = vunpack.c.l.bf16 %v1939
      %v1956 = vunpack.c.l.bf16 %v1940
      %v1957 = vadd.f32 %v1909, %v1941
      %v1958 = vadd.f32 %v1910, %v1942
      %v1959 = vadd.f32 %v1911, %v1943
      %v1960 = vadd.f32 %v1912, %v1944
      %v1961 = vadd.f32 %v1913, %v1945
      %v1962 = vadd.f32 %v1914, %v1946
      %v1963 = vadd.f32 %v1915, %v1947
      %v1964 = vadd.f32 %v1916, %v1948
      %v1965 = vadd.f32 %v1917, %v1949
      %v1966 = vadd.f32 %v1918, %v1950
      %v1967 = vadd.f32 %v1919, %v1951
      %v1968 = vadd.f32 %v1920, %v1952
      %v1969 = vadd.f32 %v1921, %v1953
      %v1970 = vadd.f32 %v1922, %v1954
      %v1971 = vadd.f32 %v1923, %v1955
      %v1972 = vadd.f32 %v1924, %v1956
      %vm1973 = vcmask 64512
      %1974 = vst.msk [vmem:[%s352] sm:$0xff] %vm1973, %v1957
      %1975 = vst.msk [vmem:[%s352 + $0x8] sm:$0xff] %vm1973, %v1958
      %1976 = vst.msk [vmem:[%s352 + $0x10] sm:$0xff] %vm1973, %v1959
      %1977 = vst.msk [vmem:[%s352 + $0x18] sm:$0xff] %vm1973, %v1960
      %1978 = vst.msk [vmem:[%s352 + $0x20] sm:$0xff] %vm1973, %v1961
      %1979 = vst.msk [vmem:[%s352 + $0x28] sm:$0xff] %vm1973, %v1962
      %1980 = vst.msk [vmem:[%s352 + $0x30] sm:$0xff] %vm1973, %v1963
      %1981 = vst.msk [vmem:[%s352 + $0x38] sm:$0xff] %vm1973, %v1964
      %1982 = vst.msk [vmem:[%s352 + $0x40] sm:$0xff] %vm1973, %v1965
      %1983 = vst.msk [vmem:[%s352 + $0x48] sm:$0xff] %vm1973, %v1966
      %1984 = vst.msk [vmem:[%s352 + $0x50] sm:$0xff] %vm1973, %v1967
      %1985 = vst.msk [vmem:[%s352 + $0x58] sm:$0xff] %vm1973, %v1968
      %1986 = vst.msk [vmem:[%s352 + $0x60] sm:$0xff] %vm1973, %v1969
      %1987 = vst.msk [vmem:[%s352 + $0x68] sm:$0xff] %vm1973, %v1970
      %1988 = vst.msk [vmem:[%s352 + $0x70] sm:$0xff] %vm1973, %v1971
      %1989 = vst.msk [vmem:[%s352 + $0x78] sm:$0xff] %vm1973, %v1972
      %p1990 = scmp.lt.s32.totalorder %s20, 3
      %s1991 = scalar_select %p1990, %s20, 3
      %s1992 = smul.addr %s1991, 16
      %s1993 = smul.addr %s1992, 8
      %s1994 = scalar_lea.vmem %s9, %s1993
      // Predicated region
      $region57: #{tpu_custom_call.1} parent=55 // pred_check
        %p1995 = pneg %p237
      $region58: #{tpu_custom_call.1} parent=55 // pred_check_branch
        %1997 = sbr.rel (%p1995) target = $region60
      $region59: #{tpu_custom_call.1} parent=55 // pred_region
        _
      $region60: #{tpu_custom_call.1} parent=55 // pred_fallthru
        _
    $region56: #{tpu_custom_call.1} parent=5 // pred_fallthru
      _
    %p1998 = scmp.le.s32.totalorder 2, %s15
    // Predicated region
    $region61: #{tpu_custom_call.1} parent=5 // pred_check
      %p1999 = pneg %p1998
    $region62: #{tpu_custom_call.1} parent=5 // pred_check_branch
      %2001 = sbr.rel (%p1999) target = $region64
    $region63: #{tpu_custom_call.1} parent=5 // pred_region
      %s2002 = ssub.s32 %s15, 2
      // Predicated region
      $region65: #{tpu_custom_call.1} parent=63 // pred_check
        %p2003 = pneg %p243
      $region66: #{tpu_custom_call.1} parent=63 // pred_check_branch
        %2005 = sbr.rel (%p2003) target = $region68
      $region67: #{tpu_custom_call.1} parent=63 // pred_region
        %p2006 = scmp.lt.s32.totalorder %s21, 3
        %s2007 = scalar_select %p2006, %s21, 3
        %s2008 = smul.addr %s2007, 16
        %s2009 = smul.addr %s2008, 8
        %s2010 = scalar_lea.vmem %s9, %s2009
      $region68: #{tpu_custom_call.1} parent=63 // pred_fallthru
        _
    $region64: #{tpu_custom_call.1} parent=5 // pred_fallthru
      _
  $region6: #{tpu_custom_call.1} parent=0 // loop_footer
    %s19 = sadd.s32 1, %s15
  $region7: #{tpu_custom_call.1} parent=0 // loop_footer_branch
    %14 = sbr.rel target = $region3
  $region8: #{tpu_custom_call.1} parent=0 // loop_exit
    _

</llo_original>
